<compile_context>
chip_gen: v7x
topology: tpu7x:2x2x1
jax: 0.10.0
libtpu: 0.0.40
codegen_flags: <defaults>
</compile_context>

<pallas_src>
import jax
import jax.numpy as jnp
from jax.experimental import pallas as pl
from jax.experimental.pallas import tpu as pltpu

BN_EPS = 1e-5


def _round_up(x, m):
    return (x + m - 1) // m * m


def _pick_tile(batch, tile_m):
    """Choose (tm, b_pad): batch-tile rows and padded batch size.

    - Small batches: a single tile covering the (8-rounded) batch.
    - Large batches: a multiple-of-128 tile (lane-dense output blocks), at
      least 2 tiles so the "parallel" grid axis can shard across v7x's two
      TensorCores, preferring an exact divisor of the batch (no padding).
    """
    b8 = _round_up(batch, 8)
    if b8 <= 256 or (b8 <= tile_m and b8 % 128 != 0):
        return b8, b8
    cap = max(128, min(_round_up(tile_m, 128), _round_up(pl.cdiv(b8, 2), 128)))
    for cand in range(cap, 127, -128):
        if b8 % cand == 0:
            return cand, b8            # exact divisor -> no padding needed
    return cap, _round_up(b8, cap)     # fall back to padding to the tile


# --------------------------------------------------------------------------
# Kernel: one batch tile of the BN-folded MLP.
# --------------------------------------------------------------------------
def dnn_normal_kernel(
    x_ref,
    w1_ref, b1_ref,
    w2_ref, b2_ref,
    w3_ref, b3_ref,
    w4t_ref, b4_ref,
    o_ref,
):
    def layer(h, w_ref, b_ref, out_dtype):
        acc = jnp.dot(h, w_ref[...], preferred_element_type=jnp.float32)
        return jnp.maximum(acc + b_ref[...], 0.0).astype(out_dtype)

    h = layer(x_ref[...], w1_ref, b1_ref, jnp.bfloat16)   # (tm, 1024) bf16
    h = layer(h, w2_ref, b2_ref, jnp.bfloat16)            # (tm, 512)  bf16
    h = layer(h, w3_ref, b3_ref, jnp.float32)             # (tm, 128)  f32 (small)

    # Final 128 -> 1 layer emitted as a lane-dense (1, tm) row:
    #   w4t row 0 holds the folded weight column; rows 1..7 are zero padding.
    z8 = jnp.dot(w4t_ref[...], h.T, preferred_element_type=jnp.float32)  # (8, tm)
    z = z8[0:1, :] + b4_ref[0, 0]                                        # (1, tm)
    # Sigmoid: exp + approximate reciprocal -> both on the EUP slot.
    o_ref[...] = pl.reciprocal(1.0 + jnp.exp(-z), approx=True)


# --------------------------------------------------------------------------
# Wrapper
# --------------------------------------------------------------------------
def dnn_normal_forward(x, folded_params, *, tile_m=1024, vmem_limit_bytes=None):
    """x: (B, in_features) float32. folded_params from fold_params()."""
    w1, b1, w2, b2, w3, b3, w4t, b4 = folded_params
    B, K = x.shape

    tm, b_pad = _pick_tile(B, tile_m)

    # Pre-cast x to the weight dtype (bf16): halves the pipelined x-tile DMA.
    x = x.astype(w1.dtype)
    if b_pad != B:
        x = jnp.pad(x, ((0, b_pad - B), (0, 0)))

    resident = lambda i: (0, 0)   # weights / biases: same block every grid step
    # TODO(synk): resident specs could use pipeline_mode=pl.Buffered(1) to skip
    # their double-buffer (~1.3 MB VMEM); not needed at tile_m <= 1024.

    out = pl.pallas_call(
        dnn_normal_kernel,
        out_shape=jax.ShapeDtypeStruct((1, b_pad), jnp.float32),
        grid_spec=pltpu.PrefetchScalarGridSpec(
            num_scalar_prefetch=0,
            grid=(b_pad // tm,),
            in_specs=[
                pl.BlockSpec((tm, K), lambda i: (i, 0)),   # x tile (pipelined)
                pl.BlockSpec(w1.shape, resident),
                pl.BlockSpec(b1.shape, resident),
                pl.BlockSpec(w2.shape, resident),
                pl.BlockSpec(b2.shape, resident),
                pl.BlockSpec(w3.shape, resident),
                pl.BlockSpec(b3.shape, resident),
                pl.BlockSpec(w4t.shape, resident),
                pl.BlockSpec(memory_space=pltpu.MemorySpace.SMEM),  # b4 scalar
            ],
            out_specs=pl.BlockSpec((1, tm), lambda i: (0, i)),
        ),
        compiler_params=pltpu.CompilerParams(
            # Independent batch tiles -> megacore sharding on v7x.
            dimension_semantics=("parallel",),
            # Default (None) fits tile_m=1024 within v5e's 16 MiB scoped VMEM;
            # pass e.g. 48<<20 here if tile_m is pushed to 2048 on v5e.
            vmem_limit_bytes=vmem_limit_bytes,
        ),
    )(x, w1, b1, w2, b2, w3, b3, w4t, b4)

    return out[0, :B].reshape(B, 1)


# --------------------------------------------------------------------------
# Parameters (PyTorch-equivalent init) + one-time BN folding
# --------------------------------------------------------------------------
def init_linear(key, fan_in, fan_out):
    """PyTorch-style Linear init: U(-1/sqrt(fan_in), 1/sqrt(fan_in))."""
    kw, kb = jax.random.split(key)
    bound = 1.0 / float(fan_in) ** 0.5
    w = jax.random.uniform(kw, (fan_in, fan_out), jnp.float32, -bound, bound)
    b = jax.random.uniform(kb, (1, fan_out), jnp.float32, -bound, bound)
    return w, b


def init_batchnorm(n):
    """Fresh BatchNorm1d: gamma=1, beta=0, running_mean=0, running_var=1."""
    return (jnp.ones((1, n), jnp.float32), jnp.zeros((1, n), jnp.float32),
            jnp.zeros((1, n), jnp.float32), jnp.ones((1, n), jnp.float32))


def make_params(key, in_features):
    dims = [in_features, 1024, 512, 128, 1]
    keys = jax.random.split(key, 4)
    params = []
    for i in range(3):
        w, b = init_linear(keys[i], dims[i], dims[i + 1])
        params.append((w, b, init_batchnorm(dims[i + 1])))
    params.append(init_linear(keys[3], dims[3], dims[4]))
    return params


def fold_params(params, weight_dtype=jnp.bfloat16):
    """Fold eval-mode BN into the following Linear; prep the final layer.

    Done once, outside the kernel. Hidden-layer weights are cast to bf16;
    biases stay f32. The final (128 -> 1) weight column is stored transposed
    as row 0 of an (8, 128) f32 tile so the kernel can produce a lane-dense
    (1, tm) output row with dot(w4t, h3.T); its bias is a (1, 1) SMEM scalar.
    """
    (w1, b1, bn1), (w2, b2, bn2), (w3, b3, bn3), (w4, b4) = params

    def fold_into_next(bn, w_next, b_next):
        gamma, beta, mean, var = bn
        scale = gamma * jax.lax.rsqrt(var + BN_EPS)   # (1, N)
        shift = beta - mean * scale                   # (1, N)
        return scale.reshape(-1, 1) * w_next, b_next + shift @ w_next

    w2f, b2f = fold_into_next(bn1, w2, b2)
    w3f, b3f = fold_into_next(bn2, w3, b3)
    w4f, b4f = fold_into_next(bn3, w4, b4)

    w4t = jnp.zeros((8, w4f.shape[0]), jnp.float32).at[0, :].set(w4f[:, 0])

    cast = lambda w: w.astype(weight_dtype)
    return (cast(w1), b1, cast(w2f), b2f, cast(w3f), b3f, w4t, b4f)


def reference_forward(x, params):
    """Pure-JAX f32 reference with the original (unfused) op order."""
    (w1, b1, bn1), (w2, b2, bn2), (w3, b3, bn3), (w4, b4) = params

    def bn(h, p):
        g, be, m, v = p
        return (h - m) * jax.lax.rsqrt(v + BN_EPS) * g + be

    h = bn(jnp.maximum(x @ w1 + b1, 0.0), bn1)
    h = bn(jnp.maximum(h @ w2 + b2, 0.0), bn2)
    h = bn(jnp.maximum(h @ w3 + b3, 0.0), bn3)
    return jax.nn.sigmoid(h @ w4 + b4)


if __name__ == "__main__":
    key = jax.random.PRNGKey(0)
    k_x, k_p = jax.random.split(key)

    batch = 8
    in_features = 64  # DNN_normal(input=64)

    x = jax.random.normal(k_x, (batch, in_features), jnp.float32)
    params = make_params(k_p, in_features)
    folded = fold_params(params)   # one-time BN fold + bf16 cast + L4 transpose

    out = dnn_normal_forward(x, folded)
    out = jax.block_until_ready(out)

    assert out.shape == (batch, 1) and out.dtype == jnp.float32

    ref = reference_forward(x, params)
    max_err = float(jnp.max(jnp.abs(out - ref)))
    assert max_err < 5e-2, f"mismatch vs reference: {max_err}"
    print("KERNEL_OK")
</pallas_src>

<mosaic_0001>
module attributes {stable_mosaic.version = 11 : i64} {
  func.func @dnn_normal_kernel(%arg0: i32, %arg1: memref<8x64xbf16, #tpu.memory_space<vmem>>, %arg2: memref<64x1024xbf16, #tpu.memory_space<vmem>>, %arg3: memref<1x1024xf32, #tpu.memory_space<vmem>>, %arg4: memref<1024x512xbf16, #tpu.memory_space<vmem>>, %arg5: memref<1x512xf32, #tpu.memory_space<vmem>>, %arg6: memref<512x128xbf16, #tpu.memory_space<vmem>>, %arg7: memref<1x128xf32, #tpu.memory_space<vmem>>, %arg8: memref<8x128xf32, #tpu.memory_space<vmem>>, %arg9: memref<1x1xf32, #tpu.memory_space<smem>>, %arg10: memref<1x8xf32, #tpu.memory_space<vmem>>) attributes {dimension_semantics = [#tpu.dimension_semantics<parallel>], iteration_bounds = array<i64: 1>, scalar_prefetch = 0 : i64, scratch_operands = 0 : i64, tpu.core_type = #tpu.core_type<tc>, window_params = [{transform_indices = @transform_0, window_bounds = array<i64: 8, 64>}, {pipeline_mode = #tpu.pipeline_mode<synchronous>, transform_indices = @transform_1, window_bounds = array<i64: 64, 1024>}, {pipeline_mode = #tpu.pipeline_mode<synchronous>, transform_indices = @transform_2, window_bounds = array<i64: 1, 1024>}, {pipeline_mode = #tpu.pipeline_mode<synchronous>, transform_indices = @transform_3, window_bounds = array<i64: 1024, 512>}, {pipeline_mode = #tpu.pipeline_mode<synchronous>, transform_indices = @transform_4, window_bounds = array<i64: 1, 512>}, {pipeline_mode = #tpu.pipeline_mode<synchronous>, transform_indices = @transform_5, window_bounds = array<i64: 512, 128>}, {pipeline_mode = #tpu.pipeline_mode<synchronous>, transform_indices = @transform_6, window_bounds = array<i64: 1, 128>}, {pipeline_mode = #tpu.pipeline_mode<synchronous>, transform_indices = @transform_7, window_bounds = array<i64: 8, 128>}, {transform_indices = @transform_8, window_bounds = array<i64: 1, 1>}, {transform_indices = @transform_9, window_bounds = array<i64: 1, 8>}]} {
    %c0 = arith.constant 0 : index
    %c0_0 = arith.constant 0 : index
    %0 = vector.load %arg1[%c0, %c0_0] : memref<8x64xbf16, #tpu.memory_space<vmem>>, vector<8x64xbf16>
    %c0_1 = arith.constant 0 : index
    %c0_2 = arith.constant 0 : index
    %1 = vector.load %arg2[%c0_1, %c0_2] : memref<64x1024xbf16, #tpu.memory_space<vmem>>, vector<64x1024xbf16>
    %cst = arith.constant dense<0.000000e+00> : vector<8x1024xf32>
    %2 = tpu.matmul %0, %1, %cst {dimension_numbers = #tpu.dot_dimension_numbers<[1], [0], [0], [1], [0, 0, 1, 1], [], []>} : vector<8x64xbf16>, vector<64x1024xbf16>, vector<8x1024xf32> -> vector<8x1024xf32>
    %c0_3 = arith.constant 0 : index
    %c0_4 = arith.constant 0 : index
    %3 = vector.load %arg3[%c0_3, %c0_4] : memref<1x1024xf32, #tpu.memory_space<vmem>>, vector<1x1024xf32>
    %4 = vector.broadcast %3 : vector<1x1024xf32> to vector<8x1024xf32>
    %5 = arith.addf %2, %4 : vector<8x1024xf32>
    %cst_5 = arith.constant 0.000000e+00 : f32
    %6 = vector.broadcast %cst_5 : f32 to vector<8x1024xf32>
    %7 = arith.maximumf %5, %6 : vector<8x1024xf32>
    %8 = arith.truncf %7 : vector<8x1024xf32> to vector<8x1024xbf16>
    %c0_6 = arith.constant 0 : index
    %c0_7 = arith.constant 0 : index
    %9 = vector.load %arg4[%c0_6, %c0_7] : memref<1024x512xbf16, #tpu.memory_space<vmem>>, vector<1024x512xbf16>
    %cst_8 = arith.constant dense<0.000000e+00> : vector<8x512xf32>
    %10 = tpu.matmul %8, %9, %cst_8 {dimension_numbers = #tpu.dot_dimension_numbers<[1], [0], [0], [1], [0, 0, 1, 1], [], []>} : vector<8x1024xbf16>, vector<1024x512xbf16>, vector<8x512xf32> -> vector<8x512xf32>
    %c0_9 = arith.constant 0 : index
    %c0_10 = arith.constant 0 : index
    %11 = vector.load %arg5[%c0_9, %c0_10] : memref<1x512xf32, #tpu.memory_space<vmem>>, vector<1x512xf32>
    %12 = vector.broadcast %11 : vector<1x512xf32> to vector<8x512xf32>
    %13 = arith.addf %10, %12 : vector<8x512xf32>
    %cst_11 = arith.constant 0.000000e+00 : f32
    %14 = vector.broadcast %cst_11 : f32 to vector<8x512xf32>
    %15 = arith.maximumf %13, %14 : vector<8x512xf32>
    %16 = arith.truncf %15 : vector<8x512xf32> to vector<8x512xbf16>
    %c0_12 = arith.constant 0 : index
    %c0_13 = arith.constant 0 : index
    %17 = vector.load %arg6[%c0_12, %c0_13] : memref<512x128xbf16, #tpu.memory_space<vmem>>, vector<512x128xbf16>
    %cst_14 = arith.constant dense<0.000000e+00> : vector<8x128xf32>
    %18 = tpu.matmul %16, %17, %cst_14 {dimension_numbers = #tpu.dot_dimension_numbers<[1], [0], [0], [1], [0, 0, 1, 1], [], []>} : vector<8x512xbf16>, vector<512x128xbf16>, vector<8x128xf32> -> vector<8x128xf32>
    %c0_15 = arith.constant 0 : index
    %c0_16 = arith.constant 0 : index
    %19 = vector.load %arg7[%c0_15, %c0_16] : memref<1x128xf32, #tpu.memory_space<vmem>>, vector<1x128xf32>
    %20 = vector.broadcast %19 : vector<1x128xf32> to vector<8x128xf32>
    %21 = arith.addf %18, %20 : vector<8x128xf32>
    %cst_17 = arith.constant 0.000000e+00 : f32
    %22 = vector.broadcast %cst_17 : f32 to vector<8x128xf32>
    %23 = arith.maximumf %21, %22 : vector<8x128xf32>
    %c0_18 = arith.constant 0 : index
    %c0_19 = arith.constant 0 : index
    %24 = vector.load %arg8[%c0_18, %c0_19] : memref<8x128xf32, #tpu.memory_space<vmem>>, vector<8x128xf32>
    %25 = tpu.transpose %23, [1, 0] : vector<8x128xf32> -> vector<128x8xf32>
    %cst_20 = arith.constant dense<0.000000e+00> : vector<8x8xf32>
    %26 = tpu.matmul %24, %25, %cst_20 {dimension_numbers = #tpu.dot_dimension_numbers<[1], [0], [0], [1], [0, 0, 1, 1], [], []>} : vector<8x128xf32>, vector<128x8xf32>, vector<8x8xf32> -> vector<8x8xf32>
    %27 = vector.extract_strided_slice %26 {offsets = [0, 0], sizes = [1, 8], strides = [1, 1]} : vector<8x8xf32> to vector<1x8xf32>
    %c0_21 = arith.constant 0 : index
    %c0_22 = arith.constant 0 : index
    %28 = memref.load %arg9[%c0_21, %c0_22] : memref<1x1xf32, #tpu.memory_space<smem>>
    %29 = vector.broadcast %28 : f32 to vector<1x8xf32>
    %30 = arith.addf %27, %29 : vector<1x8xf32>
    %cst_23 = arith.constant 0.000000e+00 : f32
    %31 = vector.broadcast %cst_23 : f32 to vector<1x8xf32>
    %32 = arith.subf %31, %30 : vector<1x8xf32>
    %33 = math.exp %32 : vector<1x8xf32>
    %cst_24 = arith.constant 1.000000e+00 : f32
    %34 = vector.broadcast %cst_24 : f32 to vector<1x8xf32>
    %35 = arith.addf %34, %33 : vector<1x8xf32>
    %36 = tpu.reciprocal %35 {approx = true} : vector<1x8xf32> -> vector<1x8xf32>
    %c0_25 = arith.constant 0 : index
    %c0_26 = arith.constant 0 : index
    %37 = vector.load %arg10[%c0_25, %c0_26] : memref<1x8xf32, #tpu.memory_space<vmem>>, vector<1x8xf32>
    tpu.vector_store %arg10[%c0_25, %c0_26], %36 {strides = array<i32>} : memref<1x8xf32, #tpu.memory_space<vmem>>, vector<1x8xf32>,
    return
  }
  func.func @transform_0(%arg0: i32) -> (i32, i32) {
    %c0_i32 = arith.constant 0 : i32
    %c0_i32_0 = arith.constant 0 : i32
    return %arg0, %c0_i32 : i32, i32
  }
  func.func @transform_1(%arg0: i32) -> (i32, i32) {
    %c0_i32 = arith.constant 0 : i32
    %c0_i32_0 = arith.constant 0 : i32
    %c0_i32_1 = arith.constant 0 : i32
    return %c0_i32, %c0_i32_0 : i32, i32
  }
  func.func @transform_2(%arg0: i32) -> (i32, i32) {
    %c0_i32 = arith.constant 0 : i32
    %c0_i32_0 = arith.constant 0 : i32
    %c0_i32_1 = arith.constant 0 : i32
    return %c0_i32, %c0_i32_0 : i32, i32
  }
  func.func @transform_3(%arg0: i32) -> (i32, i32) {
    %c0_i32 = arith.constant 0 : i32
    %c0_i32_0 = arith.constant 0 : i32
    %c0_i32_1 = arith.constant 0 : i32
    return %c0_i32, %c0_i32_0 : i32, i32
  }
  func.func @transform_4(%arg0: i32) -> (i32, i32) {
    %c0_i32 = arith.constant 0 : i32
    %c0_i32_0 = arith.constant 0 : i32
    %c0_i32_1 = arith.constant 0 : i32
    return %c0_i32, %c0_i32_0 : i32, i32
  }
  func.func @transform_5(%arg0: i32) -> (i32, i32) {
    %c0_i32 = arith.constant 0 : i32
    %c0_i32_0 = arith.constant 0 : i32
    %c0_i32_1 = arith.constant 0 : i32
    return %c0_i32, %c0_i32_0 : i32, i32
  }
  func.func @transform_6(%arg0: i32) -> (i32, i32) {
    %c0_i32 = arith.constant 0 : i32
    %c0_i32_0 = arith.constant 0 : i32
    %c0_i32_1 = arith.constant 0 : i32
    return %c0_i32, %c0_i32_0 : i32, i32
  }
  func.func @transform_7(%arg0: i32) -> (i32, i32) {
    %c0_i32 = arith.constant 0 : i32
    %c0_i32_0 = arith.constant 0 : i32
    %c0_i32_1 = arith.constant 0 : i32
    return %c0_i32, %c0_i32_0 : i32, i32
  }
  func.func @transform_8(%arg0: i32) -> (i32, i32) {
    %c0_i32 = arith.constant 0 : i32
    %c0_i32_0 = arith.constant 0 : i32
    %c0_i32_1 = arith.constant 0 : i32
    return %c0_i32, %c0_i32_0 : i32, i32
  }
  func.func @transform_9(%arg0: i32) -> (i32, i32) {
    %c0_i32 = arith.constant 0 : i32
    %c0_i32_0 = arith.constant 0 : i32
    return %c0_i32, %arg0 : i32, i32
  }
}

</mosaic_0001>

<llo_original>
// kernel: tpu_custom_call.1
$region0: #{tpu_custom_call.1}
  #allocation0 [shape = 'u32[]', space=smem, size = 0x4, offset = 0x4, fixed_abs, tag = 'smem constant byte address 0x4 - core index']
  #allocation1 [shape = 'u32[144,128]{1,0:T(1,128)}', space=vmem, size = 0x12000, scoped, tag = 'internal scratch']
  #allocation2 [shape = 'f32[1,1]{1,0:T(1,128)S(6)}', space=smem, size = 0x200, scoped, tag = 'scoped memory for tpu_custom_call.1']
  %s0 = inlined_call_operand.hbm [shape: bf16[8,64], index: 0, kind: input, shape index: {}]
  %s1 = inlined_call_operand.hbm [shape: bf16[64,1024], index: 1, kind: input, shape index: {}]
  %s2 = inlined_call_operand.vmem [shape: f32[1,1024], index: 2, kind: input, shape index: {}]
  %s3 = inlined_call_operand.hbm [shape: bf16[1024,512], index: 3, kind: input, shape index: {}]
  %s4 = inlined_call_operand.hbm [shape: f32[1,512], index: 4, kind: input, shape index: {}]
  %s5 = inlined_call_operand.hbm [shape: bf16[512,128], index: 5, kind: input, shape index: {}]
  %s6 = inlined_call_operand.vmem [shape: f32[1,128], index: 6, kind: input, shape index: {}]
  %s7 = inlined_call_operand.vmem [shape: f32[8,128], index: 7, kind: input, shape index: {}]
  %s8 = inlined_call_operand.<no memory space> [shape: f32[1,1], index: 8, kind: input, shape index: {}]
  %s9 = inlined_call_operand.hbm [shape: f32[1,8], index: 9, kind: output, shape index: {}]
  %s10 = sld [smem:[#allocation0]]
  $region66: #{tpu_custom_call.1} parent=0
    _
  %s12 = ssub.s32 1, %s10
  %s13 = scalar_select 0, %s12, %s10
  %14 = sst [smem:[#allocation2]] %s8
  $region1: #{tpu_custom_call.1} parent=0
    #allocation3 [shape = 'u8[2048]{0}', space=vmem, size = 0x800, scoped, tag = 'input window, operand 0, single buffered']
    #allocation4 [shape = 's32[1]{0}', space=sflag, size = 0x4, scoped, tag = 'scoped memory for tpu_custom_call.1']
    #allocation5 [shape = 's32[1]{0}', space=sflag, size = 0x4, scoped, tag = 'scoped memory for tpu_custom_call.1']
    #allocation6 [shape = 'u8[131072]{0}', space=vmem, size = 0x20000, scoped, tag = 'input window, operand 1, single buffered']
    #allocation7 [shape = 's32[1]{0}', space=sflag, size = 0x4, scoped, tag = 'scoped memory for tpu_custom_call.1']
    #allocation8 [shape = 'u8[1048576]{0}', space=vmem, size = 0x100000, scoped, tag = 'input window, operand 3, single buffered']
    #allocation9 [shape = 'u8[2048]{0}', space=vmem, size = 0x800, scoped, tag = 'input window, operand 4, single buffered']
    #allocation10 [shape = 's32[1]{0}', space=sflag, size = 0x4, scoped, tag = 'scoped memory for tpu_custom_call.1']
    #allocation11 [shape = 'u8[131072]{0}', space=vmem, size = 0x20000, scoped, tag = 'input window, operand 5, single buffered']
    #allocation12 [shape = 'u8[512]{0}', space=vmem, size = 0x400, scoped, tag = 'output window, operand 0, single buffered']
    %15 = vsyncpa [#allocation4], 0
    %16 = vsyncpa [#allocation7], 0
    %17 = vsyncpa [#allocation10], 0
    %18 = vsyncpa [#allocation5], 0
    // Predicated region
    $region2: #{tpu_custom_call.1} parent=1 // pred_check
      _
    $region3: #{tpu_custom_call.1} parent=1 // pred_check_branch
      %20 = sbr.rel (0) target = $region5
    $region4: #{tpu_custom_call.1} parent=1 // pred_region
      %s22 = ssub.s32 64, 64
      %23 = vsyncadd [#allocation4], %s22
      %s25 = sshll.u32 [#allocation3], 4
      %s26 = int_to_ptr.vmem [resolvable:$true] %s25
      %28 = dma.hbm_to_vmem [thread:$0]  %s0, 64, %s26, [#allocation4]
    $region5: #{tpu_custom_call.1} parent=1 // pred_fallthru
      _
    // Predicated region
    $region6: #{tpu_custom_call.1} parent=1 // pred_check
      _
    $region7: #{tpu_custom_call.1} parent=1 // pred_check_branch
      %30 = sbr.rel (0) target = $region9
    $region8: #{tpu_custom_call.1} parent=1 // pred_region
      %s32 = ssub.s32 4096, 4096
      %33 = vsyncadd [#allocation7], %s32
      %s34 = sshll.u32 [#allocation6], 4
      %s35 = int_to_ptr.vmem [resolvable:$true] %s34
      %40 = dma.hbm_to_vmem [thread:$0]  %s1, 4096, %s35, [#allocation7], 512, 512, 32
    $region9: #{tpu_custom_call.1} parent=1 // pred_fallthru
      _
    // Predicated region
    $region10: #{tpu_custom_call.1} parent=1 // pred_check
      _
    $region11: #{tpu_custom_call.1} parent=1 // pred_check_branch
      %42 = sbr.rel (0) target = $region13
    $region12: #{tpu_custom_call.1} parent=1 // pred_region
      _
    $region13: #{tpu_custom_call.1} parent=1 // pred_fallthru
      _
    // Predicated region
    $region14: #{tpu_custom_call.1} parent=1 // pred_check
      _
    $region15: #{tpu_custom_call.1} parent=1 // pred_check_branch
      %44 = sbr.rel (0) target = $region17
    $region16: #{tpu_custom_call.1} parent=1 // pred_region
      %s46 = ssub.s32 32768, 32768
      %47 = vsyncadd [#allocation7], %s46
      %s48 = sshll.u32 [#allocation8], 4
      %s49 = int_to_ptr.vmem [resolvable:$true] %s48
      %54 = dma.hbm_to_vmem [thread:$0]  %s3, 32768, %s49, [#allocation7], 256, 256, 16
    $region17: #{tpu_custom_call.1} parent=1 // pred_fallthru
      _
    // Predicated region
    $region18: #{tpu_custom_call.1} parent=1 // pred_check
      _
    $region19: #{tpu_custom_call.1} parent=1 // pred_check_branch
      %56 = sbr.rel (0) target = $region21
    $region20: #{tpu_custom_call.1} parent=1 // pred_region
      %s58 = ssub.s32 64, 64
      %59 = vsyncadd [#allocation10], %s58
      %s61 = sshll.u32 [#allocation9], 4
      %s62 = int_to_ptr.vmem [resolvable:$true] %s61
      %64 = dma.hbm_to_vmem [thread:$0]  %s4, 64, %s62, [#allocation10]
    $region21: #{tpu_custom_call.1} parent=1 // pred_fallthru
      _
    // Predicated region
    $region22: #{tpu_custom_call.1} parent=1 // pred_check
      _
    $region23: #{tpu_custom_call.1} parent=1 // pred_check_branch
      %66 = sbr.rel (0) target = $region25
    $region24: #{tpu_custom_call.1} parent=1 // pred_region
      %s68 = ssub.s32 4096, 4096
      %69 = vsyncadd [#allocation10], %s68
      %s70 = sshll.u32 [#allocation11], 4
      %s71 = int_to_ptr.vmem [resolvable:$true] %s70
      %76 = dma.hbm_to_vmem [thread:$0]  %s5, 4096, %s71, [#allocation10], 64, 64, 4
    $region25: #{tpu_custom_call.1} parent=1 // pred_fallthru
      _
    // Predicated region
    $region26: #{tpu_custom_call.1} parent=1 // pred_check
      _
    $region27: #{tpu_custom_call.1} parent=1 // pred_check_branch
      %78 = sbr.rel (0) target = $region29
    $region28: #{tpu_custom_call.1} parent=1 // pred_region
      _
    $region29: #{tpu_custom_call.1} parent=1 // pred_fallthru
      _
    // Predicated region
    $region30: #{tpu_custom_call.1} parent=1 // pred_check
      _
    $region31: #{tpu_custom_call.1} parent=1 // pred_check_branch
      %80 = sbr.rel (0) target = $region33
    $region32: #{tpu_custom_call.1} parent=1 // pred_region
      _
    $region33: #{tpu_custom_call.1} parent=1 // pred_fallthru
      _
    // Predicated region
    $region34: #{tpu_custom_call.1} parent=1 // pred_check
      _
    $region35: #{tpu_custom_call.1} parent=1 // pred_check_branch
      %82 = sbr.rel (0) target = $region37
    $region36: #{tpu_custom_call.1} parent=1 // pred_region
      _
    $region37: #{tpu_custom_call.1} parent=1 // pred_fallthru
      _
    // Predicated region
    $region38: #{tpu_custom_call.1} parent=1 // pred_check
      _
    $region39: #{tpu_custom_call.1} parent=1 // pred_check_branch
      %84 = sbr.rel (0) target = $region41
    $region40: #{tpu_custom_call.1} parent=1 // pred_region
      %85 = dma.done [#allocation4], 64
    $region41: #{tpu_custom_call.1} parent=1 // pred_fallthru
      _
    // Predicated region
    $region42: #{tpu_custom_call.1} parent=1 // pred_check
      _
    $region43: #{tpu_custom_call.1} parent=1 // pred_check_branch
      %87 = sbr.rel (0) target = $region45
    $region44: #{tpu_custom_call.1} parent=1 // pred_region
      %88 = dma.done [#allocation7], 4096
    $region45: #{tpu_custom_call.1} parent=1 // pred_fallthru
      _
    // Predicated region
    $region46: #{tpu_custom_call.1} parent=1 // pred_check
      _
    $region47: #{tpu_custom_call.1} parent=1 // pred_check_branch
      %90 = sbr.rel (0) target = $region49
    $region48: #{tpu_custom_call.1} parent=1 // pred_region
      %91 = dma.done [#allocation7], 32768
    $region49: #{tpu_custom_call.1} parent=1 // pred_fallthru
      _
    // Predicated region
    $region50: #{tpu_custom_call.1} parent=1 // pred_check
      _
    $region51: #{tpu_custom_call.1} parent=1 // pred_check_branch
      %93 = sbr.rel (0) target = $region53
    $region52: #{tpu_custom_call.1} parent=1 // pred_region
      %94 = dma.done [#allocation10], 64
    $region53: #{tpu_custom_call.1} parent=1 // pred_fallthru
      _
    // Predicated region
    $region54: #{tpu_custom_call.1} parent=1 // pred_check
      _
    $region55: #{tpu_custom_call.1} parent=1 // pred_check_branch
      %96 = sbr.rel (0) target = $region57
    $region56: #{tpu_custom_call.1} parent=1 // pred_region
      %97 = dma.done [#allocation10], 4096
    $region57: #{tpu_custom_call.1} parent=1 // pred_fallthru
      _
    %v99 = vld [vmem:[#allocation3] sm:$0xf]
    %v100 = vld [vmem:[#allocation6] sm:$0xff]
    %v101 = vld [vmem:[#allocation6 + $0x8] sm:$0xff]
    %v102 = vld [vmem:[#allocation6 + $0x10] sm:$0xff]
    %v103 = vld [vmem:[#allocation6 + $0x18] sm:$0xff]
    %v104 = vld [vmem:[#allocation6 + $0x20] sm:$0xff]
    %v105 = vld [vmem:[#allocation6 + $0x28] sm:$0xff]
    %v106 = vld [vmem:[#allocation6 + $0x30] sm:$0xff]
    %v107 = vld [vmem:[#allocation6 + $0x38] sm:$0xff]
    %v108 = vld [vmem:[#allocation6 + $0x40] sm:$0xff]
    %v109 = vld [vmem:[#allocation6 + $0x48] sm:$0xff]
    %v110 = vld [vmem:[#allocation6 + $0x50] sm:$0xff]
    %v111 = vld [vmem:[#allocation6 + $0x58] sm:$0xff]
    %v112 = vld [vmem:[#allocation6 + $0x60] sm:$0xff]
    %v113 = vld [vmem:[#allocation6 + $0x68] sm:$0xff]
    %v114 = vld [vmem:[#allocation6 + $0x70] sm:$0xff]
    %v115 = vld [vmem:[#allocation6 + $0x78] sm:$0xff]
    %v116 = vld [vmem:[#allocation6 + $0x80] sm:$0xff]
    %v117 = vld [vmem:[#allocation6 + $0x88] sm:$0xff]
    %v118 = vld [vmem:[#allocation6 + $0x90] sm:$0xff]
    %v119 = vld [vmem:[#allocation6 + $0x98] sm:$0xff]
    %v120 = vld [vmem:[#allocation6 + $0xa0] sm:$0xff]
    %v121 = vld [vmem:[#allocation6 + $0xa8] sm:$0xff]
    %v122 = vld [vmem:[#allocation6 + $0xb0] sm:$0xff]
    %v123 = vld [vmem:[#allocation6 + $0xb8] sm:$0xff]
    %v124 = vld [vmem:[#allocation6 + $0xc0] sm:$0xff]
    %v125 = vld [vmem:[#allocation6 + $0xc8] sm:$0xff]
    %v126 = vld [vmem:[#allocation6 + $0xd0] sm:$0xff]
    %v127 = vld [vmem:[#allocation6 + $0xd8] sm:$0xff]
    %v128 = vld [vmem:[#allocation6 + $0xe0] sm:$0xff]
    %v129 = vld [vmem:[#allocation6 + $0xe8] sm:$0xff]
    %v130 = vld [vmem:[#allocation6 + $0xf0] sm:$0xff]
    %v131 = vld [vmem:[#allocation6 + $0xf8] sm:$0xff]
    %v132 = vld [vmem:[%s2] sm:$0xff]
    %v134 = vlaneseq
    %v135 = vshrl.u32 %v134, 7
    %v136 = vsub.s32 0, %v135
    %v137 = vrot.slane %v132, %v136
    %v138 = vlaneseq
    %v139 = vshrl.u32 %v138, 7
    %v140 = vsub.s32 1, %v139
    %v141 = vrot.slane %v132, %v140
    %v142 = vlaneseq
    %v143 = vshrl.u32 %v142, 7
    %v144 = vsub.s32 2, %v143
    %v145 = vrot.slane %v132, %v144
    %v146 = vlaneseq
    %v147 = vshrl.u32 %v146, 7
    %v148 = vsub.s32 3, %v147
    %v149 = vrot.slane %v132, %v148
    %v150 = vlaneseq
    %v151 = vshrl.u32 %v150, 7
    %v152 = vsub.s32 4, %v151
    %v153 = vrot.slane %v132, %v152
    %v154 = vlaneseq
    %v155 = vshrl.u32 %v154, 7
    %v156 = vsub.s32 5, %v155
    %v157 = vrot.slane %v132, %v156
    %v158 = vlaneseq
    %v159 = vshrl.u32 %v158, 7
    %v160 = vsub.s32 6, %v159
    %v161 = vrot.slane %v132, %v160
    %v162 = vlaneseq
    %v163 = vshrl.u32 %v162, 7
    %v164 = vsub.s32 7, %v163
    %v165 = vrot.slane %v132, %v164
    %v206 = vunpack.c.l.b16 %v100
    %v207 = vunpack.c.h.b16 %v100
    %v208 = vunpack.c.l.b16 %v101
    %v209 = vunpack.c.h.b16 %v101
    %v210 = vunpack.c.l.b16 %v102
    %v211 = vunpack.c.h.b16 %v102
    %v212 = vunpack.c.l.b16 %v103
    %v213 = vunpack.c.h.b16 %v103
    %v214 = vunpack.c.l.b16 %v104
    %v215 = vunpack.c.h.b16 %v104
    %v216 = vunpack.c.l.b16 %v105
    %v217 = vunpack.c.h.b16 %v105
    %v218 = vunpack.c.l.b16 %v106
    %v219 = vunpack.c.h.b16 %v106
    %v220 = vunpack.c.l.b16 %v107
    %v221 = vunpack.c.h.b16 %v107
    %v222 = vunpack.c.l.b16 %v108
    %v223 = vunpack.c.h.b16 %v108
    %v224 = vunpack.c.l.b16 %v109
    %v225 = vunpack.c.h.b16 %v109
    %v226 = vunpack.c.l.b16 %v110
    %v227 = vunpack.c.h.b16 %v110
    %v228 = vunpack.c.l.b16 %v111
    %v229 = vunpack.c.h.b16 %v111
    %v230 = vunpack.c.l.b16 %v112
    %v231 = vunpack.c.h.b16 %v112
    %v232 = vunpack.c.l.b16 %v113
    %v233 = vunpack.c.h.b16 %v113
    %v234 = vunpack.c.l.b16 %v114
    %v235 = vunpack.c.h.b16 %v114
    %v236 = vunpack.c.l.b16 %v115
    %v237 = vunpack.c.h.b16 %v115
    %v238 = vunpack.c.l.b16 %v116
    %v239 = vunpack.c.h.b16 %v116
    %v240 = vunpack.c.l.b16 %v117
    %v241 = vunpack.c.h.b16 %v117
    %v242 = vunpack.c.l.b16 %v118
    %v243 = vunpack.c.h.b16 %v118
    %v244 = vunpack.c.l.b16 %v119
    %v245 = vunpack.c.h.b16 %v119
    %v246 = vunpack.c.l.b16 %v120
    %v247 = vunpack.c.h.b16 %v120
    %v248 = vunpack.c.l.b16 %v121
    %v249 = vunpack.c.h.b16 %v121
    %v250 = vunpack.c.l.b16 %v122
    %v251 = vunpack.c.h.b16 %v122
    %v252 = vunpack.c.l.b16 %v123
    %v253 = vunpack.c.h.b16 %v123
    %v254 = vunpack.c.l.b16 %v124
    %v255 = vunpack.c.h.b16 %v124
    %v256 = vunpack.c.l.b16 %v125
    %v257 = vunpack.c.h.b16 %v125
    %v258 = vunpack.c.l.b16 %v126
    %v259 = vunpack.c.h.b16 %v126
    %v260 = vunpack.c.l.b16 %v127
    %v261 = vunpack.c.h.b16 %v127
    %v262 = vunpack.c.l.b16 %v128
    %v263 = vunpack.c.h.b16 %v128
    %v264 = vunpack.c.l.b16 %v129
    %v265 = vunpack.c.h.b16 %v129
    %v266 = vunpack.c.l.b16 %v130
    %v267 = vunpack.c.h.b16 %v130
    %v268 = vunpack.c.l.b16 %v131
    %v269 = vunpack.c.h.b16 %v131
    %v270 = vpack.c.b16 %v214, %v206
    %v271 = vpack.c.b16 %v215, %v207
    %v272 = vpack.c.b16 %v216, %v208
    %v273 = vpack.c.b16 %v217, %v209
    %v274 = vpack.c.b16 %v218, %v210
    %v275 = vpack.c.b16 %v219, %v211
    %v276 = vpack.c.b16 %v220, %v212
    %v277 = vpack.c.b16 %v221, %v213
    %v278 = vpack.c.b16 %v230, %v222
    %v279 = vpack.c.b16 %v231, %v223
    %v280 = vpack.c.b16 %v232, %v224
    %v281 = vpack.c.b16 %v233, %v225
    %v282 = vpack.c.b16 %v234, %v226
    %v283 = vpack.c.b16 %v235, %v227
    %v284 = vpack.c.b16 %v236, %v228
    %v285 = vpack.c.b16 %v237, %v229
    %v286 = vpack.c.b16 %v246, %v238
    %v287 = vpack.c.b16 %v247, %v239
    %v288 = vpack.c.b16 %v248, %v240
    %v289 = vpack.c.b16 %v249, %v241
    %v290 = vpack.c.b16 %v250, %v242
    %v291 = vpack.c.b16 %v251, %v243
    %v292 = vpack.c.b16 %v252, %v244
    %v293 = vpack.c.b16 %v253, %v245
    %v294 = vpack.c.b16 %v262, %v254
    %v295 = vpack.c.b16 %v263, %v255
    %v296 = vpack.c.b16 %v264, %v256
    %v297 = vpack.c.b16 %v265, %v257
    %v298 = vpack.c.b16 %v266, %v258
    %v299 = vpack.c.b16 %v267, %v259
    %v300 = vpack.c.b16 %v268, %v260
    %v301 = vpack.c.b16 %v269, %v261
    %vm334 = vcmask 523264
    %v336 = vsel %vm334, %v99, 0
    %338 = vmatprep.subr.bf16.mxu0 %v271
    %339 = vmatpush1.bf16.msra.mxu0 %v270
    %340 = vmatprep.subr.bf16.mxu0 %v279
    %341 = vmatpush1.bf16.msra.mxu0 %v278
    %342 = vmatprep.subr.bf16.mxu0 %v287
    %343 = vmatpush1.bf16.msra.mxu0 %v286
    %344 = vmatprep.subr.bf16.mxu0 %v295
    %345 = vmatpush1.bf16.msra.mxu0 %v294
    %346 = vmatprep.subr.bf16.mxu0 0
    %347 = vmatpush1.bf16.msra.mxu0 0
    %348 = vmatprep.subr.bf16.mxu0 0
    %349 = vmatpush1.bf16.msra.mxu0 0
    %350 = vmatprep.subr.bf16.mxu0 0
    %351 = vmatpush1.bf16.msra.mxu0 0
    %352 = vmatprep.subr.bf16.mxu0 0
    %353 = vmatpush1.bf16.msra.mxu0 0
    %354 = vmatprep.subr.bf16.mxu0 0
    %355 = vmatpush1.bf16.msra.mxu0 0
    %356 = vmatprep.subr.bf16.mxu0 0
    %357 = vmatpush1.bf16.msra.mxu0 0
    %358 = vmatprep.subr.bf16.mxu0 0
    %359 = vmatpush1.bf16.msra.mxu0 0
    %360 = vmatprep.subr.bf16.mxu0 0
    %361 = vmatpush1.bf16.msra.mxu0 0
    %362 = vmatprep.subr.bf16.mxu0 0
    %363 = vmatpush1.bf16.msra.mxu0 0
    %364 = vmatprep.subr.bf16.mxu0 0
    %365 = vmatpush1.bf16.msra.mxu0 0
    %366 = vmatprep.subr.bf16.mxu0 0
    %367 = vmatpush1.bf16.msra.mxu0 0
    %368 = vmatprep.subr.bf16.mxu0 0
    %369 = vmatpush1.bf16.msra.mxu0 0
    %370 = vmatprep.mubr.bf16.mxu0 0
    %371 = vmatmul.mubr.bf16.gmra.mrb[0].mxu0 %v336
    %v372 = vpop.f32.mrb[0].mxu0
    %v373 = vadd.f32 %v137, %v372
    %v374 = vpop.f32.mrb[0].mxu0
    %v375 = vadd.f32 %v141, %v374
    %v376 = vpop.f32.mrb[0].mxu0
    %v377 = vpop.f32.mrb[0].mxu0
    %378 = vdwg.mxu0
    %379 = vmatprep.subr.bf16.mxu0 %v273
    %380 = vmatpush1.bf16.msra.mxu0 %v272
    %381 = vmatprep.subr.bf16.mxu0 %v281
    %382 = vmatpush1.bf16.msra.mxu0 %v280
    %383 = vmatprep.subr.bf16.mxu0 %v289
    %384 = vmatpush1.bf16.msra.mxu0 %v288
    %385 = vmatprep.subr.bf16.mxu0 %v297
    %386 = vmatpush1.bf16.msra.mxu0 %v296
    %387 = vmatprep.subr.bf16.mxu0 0
    %388 = vmatpush1.bf16.msra.mxu0 0
    %389 = vmatprep.subr.bf16.mxu0 0
    %390 = vmatpush1.bf16.msra.mxu0 0
    %391 = vmatprep.subr.bf16.mxu0 0
    %392 = vmatpush1.bf16.msra.mxu0 0
    %393 = vmatprep.subr.bf16.mxu0 0
    %394 = vmatpush1.bf16.msra.mxu0 0
    %395 = vmatprep.subr.bf16.mxu0 0
    %396 = vmatpush1.bf16.msra.mxu0 0
    %397 = vmatprep.subr.bf16.mxu0 0
    %398 = vmatpush1.bf16.msra.mxu0 0
    %399 = vmatprep.subr.bf16.mxu0 0
    %400 = vmatpush1.bf16.msra.mxu0 0
    %401 = vmatprep.subr.bf16.mxu0 0
    %402 = vmatpush1.bf16.msra.mxu0 0
    %403 = vmatprep.subr.bf16.mxu0 0
    %404 = vmatpush1.bf16.msra.mxu0 0
    %405 = vmatprep.subr.bf16.mxu0 0
    %406 = vmatpush1.bf16.msra.mxu0 0
    %407 = vmatprep.subr.bf16.mxu0 0
    %408 = vmatpush1.bf16.msra.mxu0 0
    %409 = vmatprep.subr.bf16.mxu0 0
    %410 = vmatpush1.bf16.msra.mxu0 0
    %411 = vmatprep.mubr.bf16.mxu0 0
    %412 = vmatmul.mubr.bf16.gmra.mrb[0].mxu0 %v336
    %v413 = vpop.f32.mrb[0].mxu0
    %v414 = vadd.f32 %v145, %v413
    %v415 = vpop.f32.mrb[0].mxu0
    %v416 = vadd.f32 %v149, %v415
    %v417 = vpop.f32.mrb[0].mxu0
    %v418 = vpop.f32.mrb[0].mxu0
    %419 = vdwg.mxu0
    %420 = vmatprep.subr.bf16.mxu0 %v275
    %421 = vmatpush1.bf16.msra.mxu0 %v274
    %422 = vmatprep.subr.bf16.mxu0 %v283
    %423 = vmatpush1.bf16.msra.mxu0 %v282
    %424 = vmatprep.subr.bf16.mxu0 %v291
    %425 = vmatpush1.bf16.msra.mxu0 %v290
    %426 = vmatprep.subr.bf16.mxu0 %v299
    %427 = vmatpush1.bf16.msra.mxu0 %v298
    %428 = vmatprep.subr.bf16.mxu0 0
    %429 = vmatpush1.bf16.msra.mxu0 0
    %430 = vmatprep.subr.bf16.mxu0 0
    %431 = vmatpush1.bf16.msra.mxu0 0
    %432 = vmatprep.subr.bf16.mxu0 0
    %433 = vmatpush1.bf16.msra.mxu0 0
    %434 = vmatprep.subr.bf16.mxu0 0
    %435 = vmatpush1.bf16.msra.mxu0 0
    %436 = vmatprep.subr.bf16.mxu0 0
    %437 = vmatpush1.bf16.msra.mxu0 0
    %438 = vmatprep.subr.bf16.mxu0 0
    %439 = vmatpush1.bf16.msra.mxu0 0
    %440 = vmatprep.subr.bf16.mxu0 0
    %441 = vmatpush1.bf16.msra.mxu0 0
    %442 = vmatprep.subr.bf16.mxu0 0
    %443 = vmatpush1.bf16.msra.mxu0 0
    %444 = vmatprep.subr.bf16.mxu0 0
    %445 = vmatpush1.bf16.msra.mxu0 0
    %446 = vmatprep.subr.bf16.mxu0 0
    %447 = vmatpush1.bf16.msra.mxu0 0
    %448 = vmatprep.subr.bf16.mxu0 0
    %449 = vmatpush1.bf16.msra.mxu0 0
    %450 = vmatprep.subr.bf16.mxu0 0
    %451 = vmatpush1.bf16.msra.mxu0 0
    %452 = vmatprep.mubr.bf16.mxu0 0
    %453 = vmatmul.mubr.bf16.gmra.mrb[0].mxu0 %v336
    %v454 = vpop.f32.mrb[0].mxu0
    %v455 = vadd.f32 %v153, %v454
    %v456 = vpop.f32.mrb[0].mxu0
    %v457 = vadd.f32 %v157, %v456
    %v458 = vpop.f32.mrb[0].mxu0
    %v459 = vpop.f32.mrb[0].mxu0
    %460 = vdwg.mxu0
    %461 = vmatprep.subr.bf16.mxu0 %v277
    %462 = vmatpush1.bf16.msra.mxu0 %v276
    %463 = vmatprep.subr.bf16.mxu0 %v285
    %464 = vmatpush1.bf16.msra.mxu0 %v284
    %465 = vmatprep.subr.bf16.mxu0 %v293
    %466 = vmatpush1.bf16.msra.mxu0 %v292
    %467 = vmatprep.subr.bf16.mxu0 %v301
    %468 = vmatpush1.bf16.msra.mxu0 %v300
    %469 = vmatprep.subr.bf16.mxu0 0
    %470 = vmatpush1.bf16.msra.mxu0 0
    %471 = vmatprep.subr.bf16.mxu0 0
    %472 = vmatpush1.bf16.msra.mxu0 0
    %473 = vmatprep.subr.bf16.mxu0 0
    %474 = vmatpush1.bf16.msra.mxu0 0
    %475 = vmatprep.subr.bf16.mxu0 0
    %476 = vmatpush1.bf16.msra.mxu0 0
    %477 = vmatprep.subr.bf16.mxu0 0
    %478 = vmatpush1.bf16.msra.mxu0 0
    %479 = vmatprep.subr.bf16.mxu0 0
    %480 = vmatpush1.bf16.msra.mxu0 0
    %481 = vmatprep.subr.bf16.mxu0 0
    %482 = vmatpush1.bf16.msra.mxu0 0
    %483 = vmatprep.subr.bf16.mxu0 0
    %484 = vmatpush1.bf16.msra.mxu0 0
    %485 = vmatprep.subr.bf16.mxu0 0
    %486 = vmatpush1.bf16.msra.mxu0 0
    %487 = vmatprep.subr.bf16.mxu0 0
    %488 = vmatpush1.bf16.msra.mxu0 0
    %489 = vmatprep.subr.bf16.mxu0 0
    %490 = vmatpush1.bf16.msra.mxu0 0
    %491 = vmatprep.subr.bf16.mxu0 0
    %492 = vmatpush1.bf16.msra.mxu0 0
    %493 = vmatprep.mubr.bf16.mxu0 0
    %494 = vmatmul.mubr.bf16.gmra.mrb[0].mxu0 %v336
    %v495 = vpop.f32.mrb[0].mxu0
    %v496 = vadd.f32 %v161, %v495
    %v497 = vpop.f32.mrb[0].mxu0
    %v498 = vadd.f32 %v165, %v497
    %v499 = vpop.f32.mrb[0].mxu0
    %v500 = vpop.f32.mrb[0].mxu0
    %501 = vdwg.mxu0
    %v502 = vmax.f32 %v373, 0.0
    %v503 = vmax.f32 %v375, 0.0
    %v504 = vmax.f32 %v414, 0.0
    %v505 = vmax.f32 %v416, 0.0
    %v506 = vmax.f32 %v455, 0.0
    %v507 = vmax.f32 %v457, 0.0
    %v508 = vmax.f32 %v496, 0.0
    %v509 = vmax.f32 %v498, 0.0
    %v510 = vpack.c.bf16 %v502, %v502
    %v511 = vpack.c.bf16 %v503, %v503
    %v512 = vpack.c.bf16 %v504, %v504
    %v513 = vpack.c.bf16 %v505, %v505
    %v514 = vpack.c.bf16 %v506, %v506
    %v515 = vpack.c.bf16 %v507, %v507
    %v516 = vpack.c.bf16 %v508, %v508
    %v517 = vpack.c.bf16 %v509, %v509
    %v518 = vld [vmem:[#allocation8] sm:$0xff]
    %v519 = vld [vmem:[#allocation8 + $0x8] sm:$0xff]
    %v520 = vld [vmem:[#allocation8 + $0x10] sm:$0xff]
    %v521 = vld [vmem:[#allocation8 + $0x18] sm:$0xff]
    %v522 = vld [vmem:[#allocation8 + $0x20] sm:$0xff]
    %v523 = vld [vmem:[#allocation8 + $0x28] sm:$0xff]
    %v524 = vld [vmem:[#allocation8 + $0x30] sm:$0xff]
    %v525 = vld [vmem:[#allocation8 + $0x38] sm:$0xff]
    %v526 = vld [vmem:[#allocation8 + $0x40] sm:$0xff]
    %v527 = vld [vmem:[#allocation8 + $0x48] sm:$0xff]
    %v528 = vld [vmem:[#allocation8 + $0x50] sm:$0xff]
    %v529 = vld [vmem:[#allocation8 + $0x58] sm:$0xff]
    %v530 = vld [vmem:[#allocation8 + $0x60] sm:$0xff]
    %v531 = vld [vmem:[#allocation8 + $0x68] sm:$0xff]
    %v532 = vld [vmem:[#allocation8 + $0x70] sm:$0xff]
    %v533 = vld [vmem:[#allocation8 + $0x78] sm:$0xff]
    %v534 = vld [vmem:[#allocation8 + $0x80] sm:$0xff]
    %v535 = vld [vmem:[#allocation8 + $0x88] sm:$0xff]
    %v536 = vld [vmem:[#allocation8 + $0x90] sm:$0xff]
    %v537 = vld [vmem:[#allocation8 + $0x98] sm:$0xff]
    %v538 = vld [vmem:[#allocation8 + $0xa0] sm:$0xff]
    %v539 = vld [vmem:[#allocation8 + $0xa8] sm:$0xff]
    %v540 = vld [vmem:[#allocation8 + $0xb0] sm:$0xff]
    %v541 = vld [vmem:[#allocation8 + $0xb8] sm:$0xff]
    %v542 = vld [vmem:[#allocation8 + $0xc0] sm:$0xff]
    %v543 = vld [vmem:[#allocation8 + $0xc8] sm:$0xff]
    %v544 = vld [vmem:[#allocation8 + $0xd0] sm:$0xff]
    %v545 = vld [vmem:[#allocation8 + $0xd8] sm:$0xff]
    %v546 = vld [vmem:[#allocation8 + $0xe0] sm:$0xff]
    %v547 = vld [vmem:[#allocation8 + $0xe8] sm:$0xff]
    %v548 = vld [vmem:[#allocation8 + $0xf0] sm:$0xff]
    %v549 = vld [vmem:[#allocation8 + $0xf8] sm:$0xff]
    %v550 = vld [vmem:[#allocation8 + $0x100] sm:$0xff]
    %v551 = vld [vmem:[#allocation8 + $0x108] sm:$0xff]
    %v552 = vld [vmem:[#allocation8 + $0x110] sm:$0xff]
    %v553 = vld [vmem:[#allocation8 + $0x118] sm:$0xff]
    %v554 = vld [vmem:[#allocation8 + $0x120] sm:$0xff]
    %v555 = vld [vmem:[#allocation8 + $0x128] sm:$0xff]
    %v556 = vld [vmem:[#allocation8 + $0x130] sm:$0xff]
    %v557 = vld [vmem:[#allocation8 + $0x138] sm:$0xff]
    %v558 = vld [vmem:[#allocation8 + $0x140] sm:$0xff]
    %v559 = vld [vmem:[#allocation8 + $0x148] sm:$0xff]
    %v560 = vld [vmem:[#allocation8 + $0x150] sm:$0xff]
    %v561 = vld [vmem:[#allocation8 + $0x158] sm:$0xff]
    %v562 = vld [vmem:[#allocation8 + $0x160] sm:$0xff]
    %v563 = vld [vmem:[#allocation8 + $0x168] sm:$0xff]
    %v564 = vld [vmem:[#allocation8 + $0x170] sm:$0xff]
    %v565 = vld [vmem:[#allocation8 + $0x178] sm:$0xff]
    %v566 = vld [vmem:[#allocation8 + $0x180] sm:$0xff]
    %v567 = vld [vmem:[#allocation8 + $0x188] sm:$0xff]
    %v568 = vld [vmem:[#allocation8 + $0x190] sm:$0xff]
    %v569 = vld [vmem:[#allocation8 + $0x198] sm:$0xff]
    %v570 = vld [vmem:[#allocation8 + $0x1a0] sm:$0xff]
    %v571 = vld [vmem:[#allocation8 + $0x1a8] sm:$0xff]
    %v572 = vld [vmem:[#allocation8 + $0x1b0] sm:$0xff]
    %v573 = vld [vmem:[#allocation8 + $0x1b8] sm:$0xff]
    %v574 = vld [vmem:[#allocation8 + $0x1c0] sm:$0xff]
    %v575 = vld [vmem:[#allocation8 + $0x1c8] sm:$0xff]
    %v576 = vld [vmem:[#allocation8 + $0x1d0] sm:$0xff]
    %v577 = vld [vmem:[#allocation8 + $0x1d8] sm:$0xff]
    %v578 = vld [vmem:[#allocation8 + $0x1e0] sm:$0xff]
    %v579 = vld [vmem:[#allocation8 + $0x1e8] sm:$0xff]
    %v580 = vld [vmem:[#allocation8 + $0x1f0] sm:$0xff]
    %v581 = vld [vmem:[#allocation8 + $0x1f8] sm:$0xff]
    %v582 = vld [vmem:[#allocation8 + $0x200] sm:$0xff]
    %v583 = vld [vmem:[#allocation8 + $0x208] sm:$0xff]
    %v584 = vld [vmem:[#allocation8 + $0x210] sm:$0xff]
    %v585 = vld [vmem:[#allocation8 + $0x218] sm:$0xff]
    %v586 = vld [vmem:[#allocation8 + $0x220] sm:$0xff]
    %v587 = vld [vmem:[#allocation8 + $0x228] sm:$0xff]
    %v588 = vld [vmem:[#allocation8 + $0x230] sm:$0xff]
    %v589 = vld [vmem:[#allocation8 + $0x238] sm:$0xff]
    %v590 = vld [vmem:[#allocation8 + $0x240] sm:$0xff]
    %v591 = vld [vmem:[#allocation8 + $0x248] sm:$0xff]
    %v592 = vld [vmem:[#allocation8 + $0x250] sm:$0xff]
    %v593 = vld [vmem:[#allocation8 + $0x258] sm:$0xff]
    %v594 = vld [vmem:[#allocation8 + $0x260] sm:$0xff]
    %v595 = vld [vmem:[#allocation8 + $0x268] sm:$0xff]
    %v596 = vld [vmem:[#allocation8 + $0x270] sm:$0xff]
    %v597 = vld [vmem:[#allocation8 + $0x278] sm:$0xff]
    %v598 = vld [vmem:[#allocation8 + $0x280] sm:$0xff]
    %v599 = vld [vmem:[#allocation8 + $0x288] sm:$0xff]
    %v600 = vld [vmem:[#allocation8 + $0x290] sm:$0xff]
    %v601 = vld [vmem:[#allocation8 + $0x298] sm:$0xff]
    %v602 = vld [vmem:[#allocation8 + $0x2a0] sm:$0xff]
    %v603 = vld [vmem:[#allocation8 + $0x2a8] sm:$0xff]
    %v604 = vld [vmem:[#allocation8 + $0x2b0] sm:$0xff]
    %v605 = vld [vmem:[#allocation8 + $0x2b8] sm:$0xff]
    %v606 = vld [vmem:[#allocation8 + $0x2c0] sm:$0xff]
    %v607 = vld [vmem:[#allocation8 + $0x2c8] sm:$0xff]
    %v608 = vld [vmem:[#allocation8 + $0x2d0] sm:$0xff]
    %v609 = vld [vmem:[#allocation8 + $0x2d8] sm:$0xff]
    %v610 = vld [vmem:[#allocation8 + $0x2e0] sm:$0xff]
    %v611 = vld [vmem:[#allocation8 + $0x2e8] sm:$0xff]
    %v612 = vld [vmem:[#allocation8 + $0x2f0] sm:$0xff]
    %v613 = vld [vmem:[#allocation8 + $0x2f8] sm:$0xff]
    %v614 = vld [vmem:[#allocation8 + $0x300] sm:$0xff]
    %v615 = vld [vmem:[#allocation8 + $0x308] sm:$0xff]
    %v616 = vld [vmem:[#allocation8 + $0x310] sm:$0xff]
    %v617 = vld [vmem:[#allocation8 + $0x318] sm:$0xff]
    %v618 = vld [vmem:[#allocation8 + $0x320] sm:$0xff]
    %v619 = vld [vmem:[#allocation8 + $0x328] sm:$0xff]
    %v620 = vld [vmem:[#allocation8 + $0x330] sm:$0xff]
    %v621 = vld [vmem:[#allocation8 + $0x338] sm:$0xff]
    %v622 = vld [vmem:[#allocation8 + $0x340] sm:$0xff]
    %v623 = vld [vmem:[#allocation8 + $0x348] sm:$0xff]
    %v624 = vld [vmem:[#allocation8 + $0x350] sm:$0xff]
    %v625 = vld [vmem:[#allocation8 + $0x358] sm:$0xff]
    %v626 = vld [vmem:[#allocation8 + $0x360] sm:$0xff]
    %v627 = vld [vmem:[#allocation8 + $0x368] sm:$0xff]
    %v628 = vld [vmem:[#allocation8 + $0x370] sm:$0xff]
    %v629 = vld [vmem:[#allocation8 + $0x378] sm:$0xff]
    %v630 = vld [vmem:[#allocation8 + $0x380] sm:$0xff]
    %v631 = vld [vmem:[#allocation8 + $0x388] sm:$0xff]
    %v632 = vld [vmem:[#allocation8 + $0x390] sm:$0xff]
    %v633 = vld [vmem:[#allocation8 + $0x398] sm:$0xff]
    %v634 = vld [vmem:[#allocation8 + $0x3a0] sm:$0xff]
    %v635 = vld [vmem:[#allocation8 + $0x3a8] sm:$0xff]
    %v636 = vld [vmem:[#allocation8 + $0x3b0] sm:$0xff]
    %v637 = vld [vmem:[#allocation8 + $0x3b8] sm:$0xff]
    %v638 = vld [vmem:[#allocation8 + $0x3c0] sm:$0xff]
    %v639 = vld [vmem:[#allocation8 + $0x3c8] sm:$0xff]
    %v640 = vld [vmem:[#allocation8 + $0x3d0] sm:$0xff]
    %v641 = vld [vmem:[#allocation8 + $0x3d8] sm:$0xff]
    %v642 = vld [vmem:[#allocation8 + $0x3e0] sm:$0xff]
    %v643 = vld [vmem:[#allocation8 + $0x3e8] sm:$0xff]
    %v644 = vld [vmem:[#allocation8 + $0x3f0] sm:$0xff]
    %v645 = vld [vmem:[#allocation8 + $0x3f8] sm:$0xff]
    %v646 = vld [vmem:[#allocation8 + $0x400] sm:$0xff]
    %v647 = vld [vmem:[#allocation8 + $0x408] sm:$0xff]
    %v648 = vld [vmem:[#allocation8 + $0x410] sm:$0xff]
    %v649 = vld [vmem:[#allocation8 + $0x418] sm:$0xff]
    %v650 = vld [vmem:[#allocation8 + $0x420] sm:$0xff]
    %v651 = vld [vmem:[#allocation8 + $0x428] sm:$0xff]
    %v652 = vld [vmem:[#allocation8 + $0x430] sm:$0xff]
    %v653 = vld [vmem:[#allocation8 + $0x438] sm:$0xff]
    %v654 = vld [vmem:[#allocation8 + $0x440] sm:$0xff]
    %v655 = vld [vmem:[#allocation8 + $0x448] sm:$0xff]
    %v656 = vld [vmem:[#allocation8 + $0x450] sm:$0xff]
    %v657 = vld [vmem:[#allocation8 + $0x458] sm:$0xff]
    %v658 = vld [vmem:[#allocation8 + $0x460] sm:$0xff]
    %v659 = vld [vmem:[#allocation8 + $0x468] sm:$0xff]
    %v660 = vld [vmem:[#allocation8 + $0x470] sm:$0xff]
    %v661 = vld [vmem:[#allocation8 + $0x478] sm:$0xff]
    %v662 = vld [vmem:[#allocation8 + $0x480] sm:$0xff]
    %v663 = vld [vmem:[#allocation8 + $0x488] sm:$0xff]
    %v664 = vld [vmem:[#allocation8 + $0x490] sm:$0xff]
    %v665 = vld [vmem:[#allocation8 + $0x498] sm:$0xff]
    %v666 = vld [vmem:[#allocation8 + $0x4a0] sm:$0xff]
    %v667 = vld [vmem:[#allocation8 + $0x4a8] sm:$0xff]
    %v668 = vld [vmem:[#allocation8 + $0x4b0] sm:$0xff]
    %v669 = vld [vmem:[#allocation8 + $0x4b8] sm:$0xff]
    %v670 = vld [vmem:[#allocation8 + $0x4c0] sm:$0xff]
    %v671 = vld [vmem:[#allocation8 + $0x4c8] sm:$0xff]
    %v672 = vld [vmem:[#allocation8 + $0x4d0] sm:$0xff]
    %v673 = vld [vmem:[#allocation8 + $0x4d8] sm:$0xff]
    %v674 = vld [vmem:[#allocation8 + $0x4e0] sm:$0xff]
    %v675 = vld [vmem:[#allocation8 + $0x4e8] sm:$0xff]
    %v676 = vld [vmem:[#allocation8 + $0x4f0] sm:$0xff]
    %v677 = vld [vmem:[#allocation8 + $0x4f8] sm:$0xff]
    %v678 = vld [vmem:[#allocation8 + $0x500] sm:$0xff]
    %v679 = vld [vmem:[#allocation8 + $0x508] sm:$0xff]
    %v680 = vld [vmem:[#allocation8 + $0x510] sm:$0xff]
    %v681 = vld [vmem:[#allocation8 + $0x518] sm:$0xff]
    %v682 = vld [vmem:[#allocation8 + $0x520] sm:$0xff]
    %v683 = vld [vmem:[#allocation8 + $0x528] sm:$0xff]
    %v684 = vld [vmem:[#allocation8 + $0x530] sm:$0xff]
    %v685 = vld [vmem:[#allocation8 + $0x538] sm:$0xff]
    %v686 = vld [vmem:[#allocation8 + $0x540] sm:$0xff]
    %v687 = vld [vmem:[#allocation8 + $0x548] sm:$0xff]
    %v688 = vld [vmem:[#allocation8 + $0x550] sm:$0xff]
    %v689 = vld [vmem:[#allocation8 + $0x558] sm:$0xff]
    %v690 = vld [vmem:[#allocation8 + $0x560] sm:$0xff]
    %v691 = vld [vmem:[#allocation8 + $0x568] sm:$0xff]
    %v692 = vld [vmem:[#allocation8 + $0x570] sm:$0xff]
    %v693 = vld [vmem:[#allocation8 + $0x578] sm:$0xff]
    %v694 = vld [vmem:[#allocation8 + $0x580] sm:$0xff]
    %v695 = vld [vmem:[#allocation8 + $0x588] sm:$0xff]
    %v696 = vld [vmem:[#allocation8 + $0x590] sm:$0xff]
    %v697 = vld [vmem:[#allocation8 + $0x598] sm:$0xff]
    %v698 = vld [vmem:[#allocation8 + $0x5a0] sm:$0xff]
    %v699 = vld [vmem:[#allocation8 + $0x5a8] sm:$0xff]
    %v700 = vld [vmem:[#allocation8 + $0x5b0] sm:$0xff]
    %v701 = vld [vmem:[#allocation8 + $0x5b8] sm:$0xff]
    %v702 = vld [vmem:[#allocation8 + $0x5c0] sm:$0xff]
    %v703 = vld [vmem:[#allocation8 + $0x5c8] sm:$0xff]
    %v704 = vld [vmem:[#allocation8 + $0x5d0] sm:$0xff]
    %v705 = vld [vmem:[#allocation8 + $0x5d8] sm:$0xff]
    %v706 = vld [vmem:[#allocation8 + $0x5e0] sm:$0xff]
    %v707 = vld [vmem:[#allocation8 + $0x5e8] sm:$0xff]
    %v708 = vld [vmem:[#allocation8 + $0x5f0] sm:$0xff]
    %v709 = vld [vmem:[#allocation8 + $0x5f8] sm:$0xff]
    %v710 = vld [vmem:[#allocation8 + $0x600] sm:$0xff]
    %v711 = vld [vmem:[#allocation8 + $0x608] sm:$0xff]
    %v712 = vld [vmem:[#allocation8 + $0x610] sm:$0xff]
    %v713 = vld [vmem:[#allocation8 + $0x618] sm:$0xff]
    %v714 = vld [vmem:[#allocation8 + $0x620] sm:$0xff]
    %v715 = vld [vmem:[#allocation8 + $0x628] sm:$0xff]
    %v716 = vld [vmem:[#allocation8 + $0x630] sm:$0xff]
    %v717 = vld [vmem:[#allocation8 + $0x638] sm:$0xff]
    %v718 = vld [vmem:[#allocation8 + $0x640] sm:$0xff]
    %v719 = vld [vmem:[#allocation8 + $0x648] sm:$0xff]
    %v720 = vld [vmem:[#allocation8 + $0x650] sm:$0xff]
    %v721 = vld [vmem:[#allocation8 + $0x658] sm:$0xff]
    %v722 = vld [vmem:[#allocation8 + $0x660] sm:$0xff]
    %v723 = vld [vmem:[#allocation8 + $0x668] sm:$0xff]
    %v724 = vld [vmem:[#allocation8 + $0x670] sm:$0xff]
    %v725 = vld [vmem:[#allocation8 + $0x678] sm:$0xff]
    %v726 = vld [vmem:[#allocation8 + $0x680] sm:$0xff]
    %v727 = vld [vmem:[#allocation8 + $0x688] sm:$0xff]
    %v728 = vld [vmem:[#allocation8 + $0x690] sm:$0xff]
    %v729 = vld [vmem:[#allocation8 + $0x698] sm:$0xff]
    %v730 = vld [vmem:[#allocation8 + $0x6a0] sm:$0xff]
    %v731 = vld [vmem:[#allocation8 + $0x6a8] sm:$0xff]
    %v732 = vld [vmem:[#allocation8 + $0x6b0] sm:$0xff]
    %v733 = vld [vmem:[#allocation8 + $0x6b8] sm:$0xff]
    %v734 = vld [vmem:[#allocation8 + $0x6c0] sm:$0xff]
    %v735 = vld [vmem:[#allocation8 + $0x6c8] sm:$0xff]
    %v736 = vld [vmem:[#allocation8 + $0x6d0] sm:$0xff]
    %v737 = vld [vmem:[#allocation8 + $0x6d8] sm:$0xff]
    %v738 = vld [vmem:[#allocation8 + $0x6e0] sm:$0xff]
    %v739 = vld [vmem:[#allocation8 + $0x6e8] sm:$0xff]
    %v740 = vld [vmem:[#allocation8 + $0x6f0] sm:$0xff]
    %v741 = vld [vmem:[#allocation8 + $0x6f8] sm:$0xff]
    %v742 = vld [vmem:[#allocation8 + $0x700] sm:$0xff]
    %v743 = vld [vmem:[#allocation8 + $0x708] sm:$0xff]
    %v744 = vld [vmem:[#allocation8 + $0x710] sm:$0xff]
    %v745 = vld [vmem:[#allocation8 + $0x718] sm:$0xff]
    %v746 = vld [vmem:[#allocation8 + $0x720] sm:$0xff]
    %v747 = vld [vmem:[#allocation8 + $0x728] sm:$0xff]
    %v748 = vld [vmem:[#allocation8 + $0x730] sm:$0xff]
    %v749 = vld [vmem:[#allocation8 + $0x738] sm:$0xff]
    %v750 = vld [vmem:[#allocation8 + $0x740] sm:$0xff]
    %v751 = vld [vmem:[#allocation8 + $0x748] sm:$0xff]
    %v752 = vld [vmem:[#allocation8 + $0x750] sm:$0xff]
    %v753 = vld [vmem:[#allocation8 + $0x758] sm:$0xff]
    %v754 = vld [vmem:[#allocation8 + $0x760] sm:$0xff]
    %v755 = vld [vmem:[#allocation8 + $0x768] sm:$0xff]
    %v756 = vld [vmem:[#allocation8 + $0x770] sm:$0xff]
    %v757 = vld [vmem:[#allocation8 + $0x778] sm:$0xff]
    %v758 = vld [vmem:[#allocation8 + $0x780] sm:$0xff]
    %v759 = vld [vmem:[#allocation8 + $0x788] sm:$0xff]
    %v760 = vld [vmem:[#allocation8 + $0x790] sm:$0xff]
    %v761 = vld [vmem:[#allocation8 + $0x798] sm:$0xff]
    %v762 = vld [vmem:[#allocation8 + $0x7a0] sm:$0xff]
    %v763 = vld [vmem:[#allocation8 + $0x7a8] sm:$0xff]
    %v764 = vld [vmem:[#allocation8 + $0x7b0] sm:$0xff]
    %v765 = vld [vmem:[#allocation8 + $0x7b8] sm:$0xff]
    %v766 = vld [vmem:[#allocation8 + $0x7c0] sm:$0xff]
    %v767 = vld [vmem:[#allocation8 + $0x7c8] sm:$0xff]
    %v768 = vld [vmem:[#allocation8 + $0x7d0] sm:$0xff]
    %v769 = vld [vmem:[#allocation8 + $0x7d8] sm:$0xff]
    %v770 = vld [vmem:[#allocation8 + $0x7e0] sm:$0xff]
    %v771 = vld [vmem:[#allocation8 + $0x7e8] sm:$0xff]
    %v772 = vld [vmem:[#allocation8 + $0x7f0] sm:$0xff]
    %v773 = vld [vmem:[#allocation8 + $0x7f8] sm:$0xff]
    %v774 = vld [vmem:[#allocation9] sm:$0xf]
    %v776 = vlaneseq
    %v777 = vshrl.u32 %v776, 7
    %v778 = vsub.s32 0, %v777
    %v779 = vrot.slane %v774, %v778
    %v780 = vlaneseq
    %v781 = vshrl.u32 %v780, 7
    %v782 = vsub.s32 1, %v781
    %v783 = vrot.slane %v774, %v782
    %v784 = vlaneseq
    %v785 = vshrl.u32 %v784, 7
    %v786 = vsub.s32 2, %v785
    %v787 = vrot.slane %v774, %v786
    %v788 = vlaneseq
    %v789 = vshrl.u32 %v788, 7
    %v790 = vsub.s32 3, %v789
    %v791 = vrot.slane %v774, %v790
    %v1052 = vunpack.c.l.b16 %v518
    %v1053 = vunpack.c.h.b16 %v518
    %v1054 = vunpack.c.l.b16 %v519
    %v1055 = vunpack.c.h.b16 %v519
    %v1056 = vunpack.c.l.b16 %v520
    %v1057 = vunpack.c.h.b16 %v520
    %v1058 = vunpack.c.l.b16 %v521
    %v1059 = vunpack.c.h.b16 %v521
    %v1060 = vunpack.c.l.b16 %v522
    %v1061 = vunpack.c.h.b16 %v522
    %v1062 = vunpack.c.l.b16 %v523
    %v1063 = vunpack.c.h.b16 %v523
    %v1064 = vunpack.c.l.b16 %v524
    %v1065 = vunpack.c.h.b16 %v524
    %v1066 = vunpack.c.l.b16 %v525
    %v1067 = vunpack.c.h.b16 %v525
    %v1068 = vunpack.c.l.b16 %v526
    %v1069 = vunpack.c.h.b16 %v526
    %v1070 = vunpack.c.l.b16 %v527
    %v1071 = vunpack.c.h.b16 %v527
    %v1072 = vunpack.c.l.b16 %v528
    %v1073 = vunpack.c.h.b16 %v528
    %v1074 = vunpack.c.l.b16 %v529
    %v1075 = vunpack.c.h.b16 %v529
    %v1076 = vunpack.c.l.b16 %v530
    %v1077 = vunpack.c.h.b16 %v530
    %v1078 = vunpack.c.l.b16 %v531
    %v1079 = vunpack.c.h.b16 %v531
    %v1080 = vunpack.c.l.b16 %v532
    %v1081 = vunpack.c.h.b16 %v532
    %v1082 = vunpack.c.l.b16 %v533
    %v1083 = vunpack.c.h.b16 %v533
    %v1084 = vunpack.c.l.b16 %v534
    %v1085 = vunpack.c.h.b16 %v534
    %v1086 = vunpack.c.l.b16 %v535
    %v1087 = vunpack.c.h.b16 %v535
    %v1088 = vunpack.c.l.b16 %v536
    %v1089 = vunpack.c.h.b16 %v536
    %v1090 = vunpack.c.l.b16 %v537
    %v1091 = vunpack.c.h.b16 %v537
    %v1092 = vunpack.c.l.b16 %v538
    %v1093 = vunpack.c.h.b16 %v538
    %v1094 = vunpack.c.l.b16 %v539
    %v1095 = vunpack.c.h.b16 %v539
    %v1096 = vunpack.c.l.b16 %v540
    %v1097 = vunpack.c.h.b16 %v540
    %v1098 = vunpack.c.l.b16 %v541
    %v1099 = vunpack.c.h.b16 %v541
    %v1100 = vunpack.c.l.b16 %v542
    %v1101 = vunpack.c.h.b16 %v542
    %v1102 = vunpack.c.l.b16 %v543
    %v1103 = vunpack.c.h.b16 %v543
    %v1104 = vunpack.c.l.b16 %v544
    %v1105 = vunpack.c.h.b16 %v544
    %v1106 = vunpack.c.l.b16 %v545
    %v1107 = vunpack.c.h.b16 %v545
    %v1108 = vunpack.c.l.b16 %v546
    %v1109 = vunpack.c.h.b16 %v546
    %v1110 = vunpack.c.l.b16 %v547
    %v1111 = vunpack.c.h.b16 %v547
    %v1112 = vunpack.c.l.b16 %v548
    %v1113 = vunpack.c.h.b16 %v548
    %v1114 = vunpack.c.l.b16 %v549
    %v1115 = vunpack.c.h.b16 %v549
    %v1116 = vunpack.c.l.b16 %v550
    %v1117 = vunpack.c.h.b16 %v550
    %v1118 = vunpack.c.l.b16 %v551
    %v1119 = vunpack.c.h.b16 %v551
    %v1120 = vunpack.c.l.b16 %v552
    %v1121 = vunpack.c.h.b16 %v552
    %v1122 = vunpack.c.l.b16 %v553
    %v1123 = vunpack.c.h.b16 %v553
    %v1124 = vunpack.c.l.b16 %v554
    %v1125 = vunpack.c.h.b16 %v554
    %v1126 = vunpack.c.l.b16 %v555
    %v1127 = vunpack.c.h.b16 %v555
    %v1128 = vunpack.c.l.b16 %v556
    %v1129 = vunpack.c.h.b16 %v556
    %v1130 = vunpack.c.l.b16 %v557
    %v1131 = vunpack.c.h.b16 %v557
    %v1132 = vunpack.c.l.b16 %v558
    %v1133 = vunpack.c.h.b16 %v558
    %v1134 = vunpack.c.l.b16 %v559
    %v1135 = vunpack.c.h.b16 %v559
    %v1136 = vunpack.c.l.b16 %v560
    %v1137 = vunpack.c.h.b16 %v560
    %v1138 = vunpack.c.l.b16 %v561
    %v1139 = vunpack.c.h.b16 %v561
    %v1140 = vunpack.c.l.b16 %v562
    %v1141 = vunpack.c.h.b16 %v562
    %v1142 = vunpack.c.l.b16 %v563
    %v1143 = vunpack.c.h.b16 %v563
    %v1144 = vunpack.c.l.b16 %v564
    %v1145 = vunpack.c.h.b16 %v564
    %v1146 = vunpack.c.l.b16 %v565
    %v1147 = vunpack.c.h.b16 %v565
    %v1148 = vunpack.c.l.b16 %v566
    %v1149 = vunpack.c.h.b16 %v566
    %v1150 = vunpack.c.l.b16 %v567
    %v1151 = vunpack.c.h.b16 %v567
    %v1152 = vunpack.c.l.b16 %v568
    %v1153 = vunpack.c.h.b16 %v568
    %v1154 = vunpack.c.l.b16 %v569
    %v1155 = vunpack.c.h.b16 %v569
    %v1156 = vunpack.c.l.b16 %v570
    %v1157 = vunpack.c.h.b16 %v570
    %v1158 = vunpack.c.l.b16 %v571
    %v1159 = vunpack.c.h.b16 %v571
    %v1160 = vunpack.c.l.b16 %v572
    %v1161 = vunpack.c.h.b16 %v572
    %v1162 = vunpack.c.l.b16 %v573
    %v1163 = vunpack.c.h.b16 %v573
    %v1164 = vunpack.c.l.b16 %v574
    %v1165 = vunpack.c.h.b16 %v574
    %v1166 = vunpack.c.l.b16 %v575
    %v1167 = vunpack.c.h.b16 %v575
    %v1168 = vunpack.c.l.b16 %v576
    %v1169 = vunpack.c.h.b16 %v576
    %v1170 = vunpack.c.l.b16 %v577
    %v1171 = vunpack.c.h.b16 %v577
    %v1172 = vunpack.c.l.b16 %v578
    %v1173 = vunpack.c.h.b16 %v578
    %v1174 = vunpack.c.l.b16 %v579
    %v1175 = vunpack.c.h.b16 %v579
    %v1176 = vunpack.c.l.b16 %v580
    %v1177 = vunpack.c.h.b16 %v580
    %v1178 = vunpack.c.l.b16 %v581
    %v1179 = vunpack.c.h.b16 %v581
    %v1180 = vunpack.c.l.b16 %v582
    %v1181 = vunpack.c.h.b16 %v582
    %v1182 = vunpack.c.l.b16 %v583
    %v1183 = vunpack.c.h.b16 %v583
    %v1184 = vunpack.c.l.b16 %v584
    %v1185 = vunpack.c.h.b16 %v584
    %v1186 = vunpack.c.l.b16 %v585
    %v1187 = vunpack.c.h.b16 %v585
    %v1188 = vunpack.c.l.b16 %v586
    %v1189 = vunpack.c.h.b16 %v586
    %v1190 = vunpack.c.l.b16 %v587
    %v1191 = vunpack.c.h.b16 %v587
    %v1192 = vunpack.c.l.b16 %v588
    %v1193 = vunpack.c.h.b16 %v588
    %v1194 = vunpack.c.l.b16 %v589
    %v1195 = vunpack.c.h.b16 %v589
    %v1196 = vunpack.c.l.b16 %v590
    %v1197 = vunpack.c.h.b16 %v590
    %v1198 = vunpack.c.l.b16 %v591
    %v1199 = vunpack.c.h.b16 %v591
    %v1200 = vunpack.c.l.b16 %v592
    %v1201 = vunpack.c.h.b16 %v592
    %v1202 = vunpack.c.l.b16 %v593
    %v1203 = vunpack.c.h.b16 %v593
    %v1204 = vunpack.c.l.b16 %v594
    %v1205 = vunpack.c.h.b16 %v594
    %v1206 = vunpack.c.l.b16 %v595
    %v1207 = vunpack.c.h.b16 %v595
    %v1208 = vunpack.c.l.b16 %v596
    %v1209 = vunpack.c.h.b16 %v596
    %v1210 = vunpack.c.l.b16 %v597
    %v1211 = vunpack.c.h.b16 %v597
    %v1212 = vunpack.c.l.b16 %v598
    %v1213 = vunpack.c.h.b16 %v598
    %v1214 = vunpack.c.l.b16 %v599
    %v1215 = vunpack.c.h.b16 %v599
    %v1216 = vunpack.c.l.b16 %v600
    %v1217 = vunpack.c.h.b16 %v600
    %v1218 = vunpack.c.l.b16 %v601
    %v1219 = vunpack.c.h.b16 %v601
    %v1220 = vunpack.c.l.b16 %v602
    %v1221 = vunpack.c.h.b16 %v602
    %v1222 = vunpack.c.l.b16 %v603
    %v1223 = vunpack.c.h.b16 %v603
    %v1224 = vunpack.c.l.b16 %v604
    %v1225 = vunpack.c.h.b16 %v604
    %v1226 = vunpack.c.l.b16 %v605
    %v1227 = vunpack.c.h.b16 %v605
    %v1228 = vunpack.c.l.b16 %v606
    %v1229 = vunpack.c.h.b16 %v606
    %v1230 = vunpack.c.l.b16 %v607
    %v1231 = vunpack.c.h.b16 %v607
    %v1232 = vunpack.c.l.b16 %v608
    %v1233 = vunpack.c.h.b16 %v608
    %v1234 = vunpack.c.l.b16 %v609
    %v1235 = vunpack.c.h.b16 %v609
    %v1236 = vunpack.c.l.b16 %v610
    %v1237 = vunpack.c.h.b16 %v610
    %v1238 = vunpack.c.l.b16 %v611
    %v1239 = vunpack.c.h.b16 %v611
    %v1240 = vunpack.c.l.b16 %v612
    %v1241 = vunpack.c.h.b16 %v612
    %v1242 = vunpack.c.l.b16 %v613
    %v1243 = vunpack.c.h.b16 %v613
    %v1244 = vunpack.c.l.b16 %v614
    %v1245 = vunpack.c.h.b16 %v614
    %v1246 = vunpack.c.l.b16 %v615
    %v1247 = vunpack.c.h.b16 %v615
    %v1248 = vunpack.c.l.b16 %v616
    %v1249 = vunpack.c.h.b16 %v616
    %v1250 = vunpack.c.l.b16 %v617
    %v1251 = vunpack.c.h.b16 %v617
    %v1252 = vunpack.c.l.b16 %v618
    %v1253 = vunpack.c.h.b16 %v618
    %v1254 = vunpack.c.l.b16 %v619
    %v1255 = vunpack.c.h.b16 %v619
    %v1256 = vunpack.c.l.b16 %v620
    %v1257 = vunpack.c.h.b16 %v620
    %v1258 = vunpack.c.l.b16 %v621
    %v1259 = vunpack.c.h.b16 %v621
    %v1260 = vunpack.c.l.b16 %v622
    %v1261 = vunpack.c.h.b16 %v622
    %v1262 = vunpack.c.l.b16 %v623
    %v1263 = vunpack.c.h.b16 %v623
    %v1264 = vunpack.c.l.b16 %v624
    %v1265 = vunpack.c.h.b16 %v624
    %v1266 = vunpack.c.l.b16 %v625
    %v1267 = vunpack.c.h.b16 %v625
    %v1268 = vunpack.c.l.b16 %v626
    %v1269 = vunpack.c.h.b16 %v626
    %v1270 = vunpack.c.l.b16 %v627
    %v1271 = vunpack.c.h.b16 %v627
    %v1272 = vunpack.c.l.b16 %v628
    %v1273 = vunpack.c.h.b16 %v628
    %v1274 = vunpack.c.l.b16 %v629
    %v1275 = vunpack.c.h.b16 %v629
    %v1276 = vunpack.c.l.b16 %v630
    %v1277 = vunpack.c.h.b16 %v630
    %v1278 = vunpack.c.l.b16 %v631
    %v1279 = vunpack.c.h.b16 %v631
    %v1280 = vunpack.c.l.b16 %v632
    %v1281 = vunpack.c.h.b16 %v632
    %v1282 = vunpack.c.l.b16 %v633
    %v1283 = vunpack.c.h.b16 %v633
    %v1284 = vunpack.c.l.b16 %v634
    %v1285 = vunpack.c.h.b16 %v634
    %v1286 = vunpack.c.l.b16 %v635
    %v1287 = vunpack.c.h.b16 %v635
    %v1288 = vunpack.c.l.b16 %v636
    %v1289 = vunpack.c.h.b16 %v636
    %v1290 = vunpack.c.l.b16 %v637
    %v1291 = vunpack.c.h.b16 %v637
    %v1292 = vunpack.c.l.b16 %v638
    %v1293 = vunpack.c.h.b16 %v638
    %v1294 = vunpack.c.l.b16 %v639
    %v1295 = vunpack.c.h.b16 %v639
    %v1296 = vunpack.c.l.b16 %v640
    %v1297 = vunpack.c.h.b16 %v640
    %v1298 = vunpack.c.l.b16 %v641
    %v1299 = vunpack.c.h.b16 %v641
    %v1300 = vunpack.c.l.b16 %v642
    %v1301 = vunpack.c.h.b16 %v642
    %v1302 = vunpack.c.l.b16 %v643
    %v1303 = vunpack.c.h.b16 %v643
    %v1304 = vunpack.c.l.b16 %v644
    %v1305 = vunpack.c.h.b16 %v644
    %v1306 = vunpack.c.l.b16 %v645
    %v1307 = vunpack.c.h.b16 %v645
    %v1308 = vunpack.c.l.b16 %v646
    %v1309 = vunpack.c.h.b16 %v646
    %v1310 = vunpack.c.l.b16 %v647
    %v1311 = vunpack.c.h.b16 %v647
    %v1312 = vunpack.c.l.b16 %v648
    %v1313 = vunpack.c.h.b16 %v648
    %v1314 = vunpack.c.l.b16 %v649
    %v1315 = vunpack.c.h.b16 %v649
    %v1316 = vunpack.c.l.b16 %v650
    %v1317 = vunpack.c.h.b16 %v650
    %v1318 = vunpack.c.l.b16 %v651
    %v1319 = vunpack.c.h.b16 %v651
    %v1320 = vunpack.c.l.b16 %v652
    %v1321 = vunpack.c.h.b16 %v652
    %v1322 = vunpack.c.l.b16 %v653
    %v1323 = vunpack.c.h.b16 %v653
    %v1324 = vunpack.c.l.b16 %v654
    %v1325 = vunpack.c.h.b16 %v654
    %v1326 = vunpack.c.l.b16 %v655
    %v1327 = vunpack.c.h.b16 %v655
    %v1328 = vunpack.c.l.b16 %v656
    %v1329 = vunpack.c.h.b16 %v656
    %v1330 = vunpack.c.l.b16 %v657
    %v1331 = vunpack.c.h.b16 %v657
    %v1332 = vunpack.c.l.b16 %v658
    %v1333 = vunpack.c.h.b16 %v658
    %v1334 = vunpack.c.l.b16 %v659
    %v1335 = vunpack.c.h.b16 %v659
    %v1336 = vunpack.c.l.b16 %v660
    %v1337 = vunpack.c.h.b16 %v660
    %v1338 = vunpack.c.l.b16 %v661
    %v1339 = vunpack.c.h.b16 %v661
    %v1340 = vunpack.c.l.b16 %v662
    %v1341 = vunpack.c.h.b16 %v662
    %v1342 = vunpack.c.l.b16 %v663
    %v1343 = vunpack.c.h.b16 %v663
    %v1344 = vunpack.c.l.b16 %v664
    %v1345 = vunpack.c.h.b16 %v664
    %v1346 = vunpack.c.l.b16 %v665
    %v1347 = vunpack.c.h.b16 %v665
    %v1348 = vunpack.c.l.b16 %v666
    %v1349 = vunpack.c.h.b16 %v666
    %v1350 = vunpack.c.l.b16 %v667
    %v1351 = vunpack.c.h.b16 %v667
    %v1352 = vunpack.c.l.b16 %v668
    %v1353 = vunpack.c.h.b16 %v668
    %v1354 = vunpack.c.l.b16 %v669
    %v1355 = vunpack.c.h.b16 %v669
    %v1356 = vunpack.c.l.b16 %v670
    %v1357 = vunpack.c.h.b16 %v670
    %v1358 = vunpack.c.l.b16 %v671
    %v1359 = vunpack.c.h.b16 %v671
    %v1360 = vunpack.c.l.b16 %v672
    %v1361 = vunpack.c.h.b16 %v672
    %v1362 = vunpack.c.l.b16 %v673
    %v1363 = vunpack.c.h.b16 %v673
    %v1364 = vunpack.c.l.b16 %v674
    %v1365 = vunpack.c.h.b16 %v674
    %v1366 = vunpack.c.l.b16 %v675
    %v1367 = vunpack.c.h.b16 %v675
    %v1368 = vunpack.c.l.b16 %v676
    %v1369 = vunpack.c.h.b16 %v676
    %v1370 = vunpack.c.l.b16 %v677
    %v1371 = vunpack.c.h.b16 %v677
    %v1372 = vunpack.c.l.b16 %v678
    %v1373 = vunpack.c.h.b16 %v678
    %v1374 = vunpack.c.l.b16 %v679
    %v1375 = vunpack.c.h.b16 %v679
    %v1376 = vunpack.c.l.b16 %v680
    %v1377 = vunpack.c.h.b16 %v680
    %v1378 = vunpack.c.l.b16 %v681
    %v1379 = vunpack.c.h.b16 %v681
    %v1380 = vunpack.c.l.b16 %v682
    %v1381 = vunpack.c.h.b16 %v682
    %v1382 = vunpack.c.l.b16 %v683
    %v1383 = vunpack.c.h.b16 %v683
    %v1384 = vunpack.c.l.b16 %v684
    %v1385 = vunpack.c.h.b16 %v684
    %v1386 = vunpack.c.l.b16 %v685
    %v1387 = vunpack.c.h.b16 %v685
    %v1388 = vunpack.c.l.b16 %v686
    %v1389 = vunpack.c.h.b16 %v686
    %v1390 = vunpack.c.l.b16 %v687
    %v1391 = vunpack.c.h.b16 %v687
    %v1392 = vunpack.c.l.b16 %v688
    %v1393 = vunpack.c.h.b16 %v688
    %v1394 = vunpack.c.l.b16 %v689
    %v1395 = vunpack.c.h.b16 %v689
    %v1396 = vunpack.c.l.b16 %v690
    %v1397 = vunpack.c.h.b16 %v690
    %v1398 = vunpack.c.l.b16 %v691
    %v1399 = vunpack.c.h.b16 %v691
    %v1400 = vunpack.c.l.b16 %v692
    %v1401 = vunpack.c.h.b16 %v692
    %v1402 = vunpack.c.l.b16 %v693
    %v1403 = vunpack.c.h.b16 %v693
    %v1404 = vunpack.c.l.b16 %v694
    %v1405 = vunpack.c.h.b16 %v694
    %v1406 = vunpack.c.l.b16 %v695
    %v1407 = vunpack.c.h.b16 %v695
    %v1408 = vunpack.c.l.b16 %v696
    %v1409 = vunpack.c.h.b16 %v696
    %v1410 = vunpack.c.l.b16 %v697
    %v1411 = vunpack.c.h.b16 %v697
    %v1412 = vunpack.c.l.b16 %v698
    %v1413 = vunpack.c.h.b16 %v698
    %v1414 = vunpack.c.l.b16 %v699
    %v1415 = vunpack.c.h.b16 %v699
    %v1416 = vunpack.c.l.b16 %v700
    %v1417 = vunpack.c.h.b16 %v700
    %v1418 = vunpack.c.l.b16 %v701
    %v1419 = vunpack.c.h.b16 %v701
    %v1420 = vunpack.c.l.b16 %v702
    %v1421 = vunpack.c.h.b16 %v702
    %v1422 = vunpack.c.l.b16 %v703
    %v1423 = vunpack.c.h.b16 %v703
    %v1424 = vunpack.c.l.b16 %v704
    %v1425 = vunpack.c.h.b16 %v704
    %v1426 = vunpack.c.l.b16 %v705
    %v1427 = vunpack.c.h.b16 %v705
    %v1428 = vunpack.c.l.b16 %v706
    %v1429 = vunpack.c.h.b16 %v706
    %v1430 = vunpack.c.l.b16 %v707
    %v1431 = vunpack.c.h.b16 %v707
    %v1432 = vunpack.c.l.b16 %v708
    %v1433 = vunpack.c.h.b16 %v708
    %v1434 = vunpack.c.l.b16 %v709
    %v1435 = vunpack.c.h.b16 %v709
    %v1436 = vunpack.c.l.b16 %v710
    %v1437 = vunpack.c.h.b16 %v710
    %v1438 = vunpack.c.l.b16 %v711
    %v1439 = vunpack.c.h.b16 %v711
    %v1440 = vunpack.c.l.b16 %v712
    %v1441 = vunpack.c.h.b16 %v712
    %v1442 = vunpack.c.l.b16 %v713
    %v1443 = vunpack.c.h.b16 %v713
    %v1444 = vunpack.c.l.b16 %v714
    %v1445 = vunpack.c.h.b16 %v714
    %v1446 = vunpack.c.l.b16 %v715
    %v1447 = vunpack.c.h.b16 %v715
    %v1448 = vunpack.c.l.b16 %v716
    %v1449 = vunpack.c.h.b16 %v716
    %v1450 = vunpack.c.l.b16 %v717
    %v1451 = vunpack.c.h.b16 %v717
    %v1452 = vunpack.c.l.b16 %v718
    %v1453 = vunpack.c.h.b16 %v718
    %v1454 = vunpack.c.l.b16 %v719
    %v1455 = vunpack.c.h.b16 %v719
    %v1456 = vunpack.c.l.b16 %v720
    %v1457 = vunpack.c.h.b16 %v720
    %v1458 = vunpack.c.l.b16 %v721
    %v1459 = vunpack.c.h.b16 %v721
    %v1460 = vunpack.c.l.b16 %v722
    %v1461 = vunpack.c.h.b16 %v722
    %v1462 = vunpack.c.l.b16 %v723
    %v1463 = vunpack.c.h.b16 %v723
    %v1464 = vunpack.c.l.b16 %v724
    %v1465 = vunpack.c.h.b16 %v724
    %v1466 = vunpack.c.l.b16 %v725
    %v1467 = vunpack.c.h.b16 %v725
    %v1468 = vunpack.c.l.b16 %v726
    %v1469 = vunpack.c.h.b16 %v726
    %v1470 = vunpack.c.l.b16 %v727
    %v1471 = vunpack.c.h.b16 %v727
    %v1472 = vunpack.c.l.b16 %v728
    %v1473 = vunpack.c.h.b16 %v728
    %v1474 = vunpack.c.l.b16 %v729
    %v1475 = vunpack.c.h.b16 %v729
    %v1476 = vunpack.c.l.b16 %v730
    %v1477 = vunpack.c.h.b16 %v730
    %v1478 = vunpack.c.l.b16 %v731
    %v1479 = vunpack.c.h.b16 %v731
    %v1480 = vunpack.c.l.b16 %v732
    %v1481 = vunpack.c.h.b16 %v732
    %v1482 = vunpack.c.l.b16 %v733
    %v1483 = vunpack.c.h.b16 %v733
    %v1484 = vunpack.c.l.b16 %v734
    %v1485 = vunpack.c.h.b16 %v734
    %v1486 = vunpack.c.l.b16 %v735
    %v1487 = vunpack.c.h.b16 %v735
    %v1488 = vunpack.c.l.b16 %v736
    %v1489 = vunpack.c.h.b16 %v736
    %v1490 = vunpack.c.l.b16 %v737
    %v1491 = vunpack.c.h.b16 %v737
    %v1492 = vunpack.c.l.b16 %v738
    %v1493 = vunpack.c.h.b16 %v738
    %v1494 = vunpack.c.l.b16 %v739
    %v1495 = vunpack.c.h.b16 %v739
    %v1496 = vunpack.c.l.b16 %v740
    %v1497 = vunpack.c.h.b16 %v740
    %v1498 = vunpack.c.l.b16 %v741
    %v1499 = vunpack.c.h.b16 %v741
    %v1500 = vunpack.c.l.b16 %v742
    %v1501 = vunpack.c.h.b16 %v742
    %v1502 = vunpack.c.l.b16 %v743
    %v1503 = vunpack.c.h.b16 %v743
    %v1504 = vunpack.c.l.b16 %v744
    %v1505 = vunpack.c.h.b16 %v744
    %v1506 = vunpack.c.l.b16 %v745
    %v1507 = vunpack.c.h.b16 %v745
    %v1508 = vunpack.c.l.b16 %v746
    %v1509 = vunpack.c.h.b16 %v746
    %v1510 = vunpack.c.l.b16 %v747
    %v1511 = vunpack.c.h.b16 %v747
    %v1512 = vunpack.c.l.b16 %v748
    %v1513 = vunpack.c.h.b16 %v748
    %v1514 = vunpack.c.l.b16 %v749
    %v1515 = vunpack.c.h.b16 %v749
    %v1516 = vunpack.c.l.b16 %v750
    %v1517 = vunpack.c.h.b16 %v750
    %v1518 = vunpack.c.l.b16 %v751
    %v1519 = vunpack.c.h.b16 %v751
    %v1520 = vunpack.c.l.b16 %v752
    %v1521 = vunpack.c.h.b16 %v752
    %v1522 = vunpack.c.l.b16 %v753
    %v1523 = vunpack.c.h.b16 %v753
    %v1524 = vunpack.c.l.b16 %v754
    %v1525 = vunpack.c.h.b16 %v754
    %v1526 = vunpack.c.l.b16 %v755
    %v1527 = vunpack.c.h.b16 %v755
    %v1528 = vunpack.c.l.b16 %v756
    %v1529 = vunpack.c.h.b16 %v756
    %v1530 = vunpack.c.l.b16 %v757
    %v1531 = vunpack.c.h.b16 %v757
    %v1532 = vunpack.c.l.b16 %v758
    %v1533 = vunpack.c.h.b16 %v758
    %v1534 = vunpack.c.l.b16 %v759
    %v1535 = vunpack.c.h.b16 %v759
    %v1536 = vunpack.c.l.b16 %v760
    %v1537 = vunpack.c.h.b16 %v760
    %v1538 = vunpack.c.l.b16 %v761
    %v1539 = vunpack.c.h.b16 %v761
    %v1540 = vunpack.c.l.b16 %v762
    %v1541 = vunpack.c.h.b16 %v762
    %v1542 = vunpack.c.l.b16 %v763
    %v1543 = vunpack.c.h.b16 %v763
    %v1544 = vunpack.c.l.b16 %v764
    %v1545 = vunpack.c.h.b16 %v764
    %v1546 = vunpack.c.l.b16 %v765
    %v1547 = vunpack.c.h.b16 %v765
    %v1548 = vunpack.c.l.b16 %v766
    %v1549 = vunpack.c.h.b16 %v766
    %v1550 = vunpack.c.l.b16 %v767
    %v1551 = vunpack.c.h.b16 %v767
    %v1552 = vunpack.c.l.b16 %v768
    %v1553 = vunpack.c.h.b16 %v768
    %v1554 = vunpack.c.l.b16 %v769
    %v1555 = vunpack.c.h.b16 %v769
    %v1556 = vunpack.c.l.b16 %v770
    %v1557 = vunpack.c.h.b16 %v770
    %v1558 = vunpack.c.l.b16 %v771
    %v1559 = vunpack.c.h.b16 %v771
    %v1560 = vunpack.c.l.b16 %v772
    %v1561 = vunpack.c.h.b16 %v772
    %v1562 = vunpack.c.l.b16 %v773
    %v1563 = vunpack.c.h.b16 %v773
    %v1564 = vpack.c.b16 %v1056, %v1052
    %v1565 = vpack.c.b16 %v1057, %v1053
    %v1566 = vpack.c.b16 %v1058, %v1054
    %v1567 = vpack.c.b16 %v1059, %v1055
    %v1568 = vpack.c.b16 %v1064, %v1060
    %v1569 = vpack.c.b16 %v1065, %v1061
    %v1570 = vpack.c.b16 %v1066, %v1062
    %v1571 = vpack.c.b16 %v1067, %v1063
    %v1572 = vpack.c.b16 %v1072, %v1068
    %v1573 = vpack.c.b16 %v1073, %v1069
    %v1574 = vpack.c.b16 %v1074, %v1070
    %v1575 = vpack.c.b16 %v1075, %v1071
    %v1576 = vpack.c.b16 %v1080, %v1076
    %v1577 = vpack.c.b16 %v1081, %v1077
    %v1578 = vpack.c.b16 %v1082, %v1078
    %v1579 = vpack.c.b16 %v1083, %v1079
    %v1580 = vpack.c.b16 %v1088, %v1084
    %v1581 = vpack.c.b16 %v1089, %v1085
    %v1582 = vpack.c.b16 %v1090, %v1086
    %v1583 = vpack.c.b16 %v1091, %v1087
    %v1584 = vpack.c.b16 %v1096, %v1092
    %v1585 = vpack.c.b16 %v1097, %v1093
    %v1586 = vpack.c.b16 %v1098, %v1094
    %v1587 = vpack.c.b16 %v1099, %v1095
    %v1588 = vpack.c.b16 %v1104, %v1100
    %v1589 = vpack.c.b16 %v1105, %v1101
    %v1590 = vpack.c.b16 %v1106, %v1102
    %v1591 = vpack.c.b16 %v1107, %v1103
    %v1592 = vpack.c.b16 %v1112, %v1108
    %v1593 = vpack.c.b16 %v1113, %v1109
    %v1594 = vpack.c.b16 %v1114, %v1110
    %v1595 = vpack.c.b16 %v1115, %v1111
    %v1596 = vpack.c.b16 %v1120, %v1116
    %v1597 = vpack.c.b16 %v1121, %v1117
    %v1598 = vpack.c.b16 %v1122, %v1118
    %v1599 = vpack.c.b16 %v1123, %v1119
    %v1600 = vpack.c.b16 %v1128, %v1124
    %v1601 = vpack.c.b16 %v1129, %v1125
    %v1602 = vpack.c.b16 %v1130, %v1126
    %v1603 = vpack.c.b16 %v1131, %v1127
    %v1604 = vpack.c.b16 %v1136, %v1132
    %v1605 = vpack.c.b16 %v1137, %v1133
    %v1606 = vpack.c.b16 %v1138, %v1134
    %v1607 = vpack.c.b16 %v1139, %v1135
    %v1608 = vpack.c.b16 %v1144, %v1140
    %v1609 = vpack.c.b16 %v1145, %v1141
    %v1610 = vpack.c.b16 %v1146, %v1142
    %v1611 = vpack.c.b16 %v1147, %v1143
    %v1612 = vpack.c.b16 %v1152, %v1148
    %v1613 = vpack.c.b16 %v1153, %v1149
    %v1614 = vpack.c.b16 %v1154, %v1150
    %v1615 = vpack.c.b16 %v1155, %v1151
    %v1616 = vpack.c.b16 %v1160, %v1156
    %v1617 = vpack.c.b16 %v1161, %v1157
    %v1618 = vpack.c.b16 %v1162, %v1158
    %v1619 = vpack.c.b16 %v1163, %v1159
    %v1620 = vpack.c.b16 %v1168, %v1164
    %v1621 = vpack.c.b16 %v1169, %v1165
    %v1622 = vpack.c.b16 %v1170, %v1166
    %v1623 = vpack.c.b16 %v1171, %v1167
    %v1624 = vpack.c.b16 %v1176, %v1172
    %v1625 = vpack.c.b16 %v1177, %v1173
    %v1626 = vpack.c.b16 %v1178, %v1174
    %v1627 = vpack.c.b16 %v1179, %v1175
    %v1628 = vpack.c.b16 %v1184, %v1180
    %v1629 = vpack.c.b16 %v1185, %v1181
    %v1630 = vpack.c.b16 %v1186, %v1182
    %v1631 = vpack.c.b16 %v1187, %v1183
    %v1632 = vpack.c.b16 %v1192, %v1188
    %v1633 = vpack.c.b16 %v1193, %v1189
    %v1634 = vpack.c.b16 %v1194, %v1190
    %v1635 = vpack.c.b16 %v1195, %v1191
    %v1636 = vpack.c.b16 %v1200, %v1196
    %v1637 = vpack.c.b16 %v1201, %v1197
    %v1638 = vpack.c.b16 %v1202, %v1198
    %v1639 = vpack.c.b16 %v1203, %v1199
    %v1640 = vpack.c.b16 %v1208, %v1204
    %v1641 = vpack.c.b16 %v1209, %v1205
    %v1642 = vpack.c.b16 %v1210, %v1206
    %v1643 = vpack.c.b16 %v1211, %v1207
    %v1644 = vpack.c.b16 %v1216, %v1212
    %v1645 = vpack.c.b16 %v1217, %v1213
    %v1646 = vpack.c.b16 %v1218, %v1214
    %v1647 = vpack.c.b16 %v1219, %v1215
    %v1648 = vpack.c.b16 %v1224, %v1220
    %v1649 = vpack.c.b16 %v1225, %v1221
    %v1650 = vpack.c.b16 %v1226, %v1222
    %v1651 = vpack.c.b16 %v1227, %v1223
    %v1652 = vpack.c.b16 %v1232, %v1228
    %v1653 = vpack.c.b16 %v1233, %v1229
    %v1654 = vpack.c.b16 %v1234, %v1230
    %v1655 = vpack.c.b16 %v1235, %v1231
    %v1656 = vpack.c.b16 %v1240, %v1236
    %v1657 = vpack.c.b16 %v1241, %v1237
    %v1658 = vpack.c.b16 %v1242, %v1238
    %v1659 = vpack.c.b16 %v1243, %v1239
    %v1660 = vpack.c.b16 %v1248, %v1244
    %v1661 = vpack.c.b16 %v1249, %v1245
    %v1662 = vpack.c.b16 %v1250, %v1246
    %v1663 = vpack.c.b16 %v1251, %v1247
    %v1664 = vpack.c.b16 %v1256, %v1252
    %v1665 = vpack.c.b16 %v1257, %v1253
    %v1666 = vpack.c.b16 %v1258, %v1254
    %v1667 = vpack.c.b16 %v1259, %v1255
    %v1668 = vpack.c.b16 %v1264, %v1260
    %v1669 = vpack.c.b16 %v1265, %v1261
    %v1670 = vpack.c.b16 %v1266, %v1262
    %v1671 = vpack.c.b16 %v1267, %v1263
    %v1672 = vpack.c.b16 %v1272, %v1268
    %v1673 = vpack.c.b16 %v1273, %v1269
    %v1674 = vpack.c.b16 %v1274, %v1270
    %v1675 = vpack.c.b16 %v1275, %v1271
    %v1676 = vpack.c.b16 %v1280, %v1276
    %v1677 = vpack.c.b16 %v1281, %v1277
    %v1678 = vpack.c.b16 %v1282, %v1278
    %v1679 = vpack.c.b16 %v1283, %v1279
    %v1680 = vpack.c.b16 %v1288, %v1284
    %v1681 = vpack.c.b16 %v1289, %v1285
    %v1682 = vpack.c.b16 %v1290, %v1286
    %v1683 = vpack.c.b16 %v1291, %v1287
    %v1684 = vpack.c.b16 %v1296, %v1292
    %v1685 = vpack.c.b16 %v1297, %v1293
    %v1686 = vpack.c.b16 %v1298, %v1294
    %v1687 = vpack.c.b16 %v1299, %v1295
    %v1688 = vpack.c.b16 %v1304, %v1300
    %v1689 = vpack.c.b16 %v1305, %v1301
    %v1690 = vpack.c.b16 %v1306, %v1302
    %v1691 = vpack.c.b16 %v1307, %v1303
    %v1692 = vpack.c.b16 %v1312, %v1308
    %v1693 = vpack.c.b16 %v1313, %v1309
    %v1694 = vpack.c.b16 %v1314, %v1310
    %v1695 = vpack.c.b16 %v1315, %v1311
    %v1696 = vpack.c.b16 %v1320, %v1316
    %v1697 = vpack.c.b16 %v1321, %v1317
    %v1698 = vpack.c.b16 %v1322, %v1318
    %v1699 = vpack.c.b16 %v1323, %v1319
    %v1700 = vpack.c.b16 %v1328, %v1324
    %v1701 = vpack.c.b16 %v1329, %v1325
    %v1702 = vpack.c.b16 %v1330, %v1326
    %v1703 = vpack.c.b16 %v1331, %v1327
    %v1704 = vpack.c.b16 %v1336, %v1332
    %v1705 = vpack.c.b16 %v1337, %v1333
    %v1706 = vpack.c.b16 %v1338, %v1334
    %v1707 = vpack.c.b16 %v1339, %v1335
    %v1708 = vpack.c.b16 %v1344, %v1340
    %v1709 = vpack.c.b16 %v1345, %v1341
    %v1710 = vpack.c.b16 %v1346, %v1342
    %v1711 = vpack.c.b16 %v1347, %v1343
    %v1712 = vpack.c.b16 %v1352, %v1348
    %v1713 = vpack.c.b16 %v1353, %v1349
    %v1714 = vpack.c.b16 %v1354, %v1350
    %v1715 = vpack.c.b16 %v1355, %v1351
    %v1716 = vpack.c.b16 %v1360, %v1356
    %v1717 = vpack.c.b16 %v1361, %v1357
    %v1718 = vpack.c.b16 %v1362, %v1358
    %v1719 = vpack.c.b16 %v1363, %v1359
    %v1720 = vpack.c.b16 %v1368, %v1364
    %v1721 = vpack.c.b16 %v1369, %v1365
    %v1722 = vpack.c.b16 %v1370, %v1366
    %v1723 = vpack.c.b16 %v1371, %v1367
    %v1724 = vpack.c.b16 %v1376, %v1372
    %v1725 = vpack.c.b16 %v1377, %v1373
    %v1726 = vpack.c.b16 %v1378, %v1374
    %v1727 = vpack.c.b16 %v1379, %v1375
    %v1728 = vpack.c.b16 %v1384, %v1380
    %v1729 = vpack.c.b16 %v1385, %v1381
    %v1730 = vpack.c.b16 %v1386, %v1382
    %v1731 = vpack.c.b16 %v1387, %v1383
    %v1732 = vpack.c.b16 %v1392, %v1388
    %v1733 = vpack.c.b16 %v1393, %v1389
    %v1734 = vpack.c.b16 %v1394, %v1390
    %v1735 = vpack.c.b16 %v1395, %v1391
    %v1736 = vpack.c.b16 %v1400, %v1396
    %v1737 = vpack.c.b16 %v1401, %v1397
    %v1738 = vpack.c.b16 %v1402, %v1398
    %v1739 = vpack.c.b16 %v1403, %v1399
    %v1740 = vpack.c.b16 %v1408, %v1404
    %v1741 = vpack.c.b16 %v1409, %v1405
    %v1742 = vpack.c.b16 %v1410, %v1406
    %v1743 = vpack.c.b16 %v1411, %v1407
    %v1744 = vpack.c.b16 %v1416, %v1412
    %v1745 = vpack.c.b16 %v1417, %v1413
    %v1746 = vpack.c.b16 %v1418, %v1414
    %v1747 = vpack.c.b16 %v1419, %v1415
    %v1748 = vpack.c.b16 %v1424, %v1420
    %v1749 = vpack.c.b16 %v1425, %v1421
    %v1750 = vpack.c.b16 %v1426, %v1422
    %v1751 = vpack.c.b16 %v1427, %v1423
    %v1752 = vpack.c.b16 %v1432, %v1428
    %v1753 = vpack.c.b16 %v1433, %v1429
    %v1754 = vpack.c.b16 %v1434, %v1430
    %v1755 = vpack.c.b16 %v1435, %v1431
    %v1756 = vpack.c.b16 %v1440, %v1436
    %v1757 = vpack.c.b16 %v1441, %v1437
    %v1758 = vpack.c.b16 %v1442, %v1438
    %v1759 = vpack.c.b16 %v1443, %v1439
    %v1760 = vpack.c.b16 %v1448, %v1444
    %v1761 = vpack.c.b16 %v1449, %v1445
    %v1762 = vpack.c.b16 %v1450, %v1446
    %v1763 = vpack.c.b16 %v1451, %v1447
    %v1764 = vpack.c.b16 %v1456, %v1452
    %v1765 = vpack.c.b16 %v1457, %v1453
    %v1766 = vpack.c.b16 %v1458, %v1454
    %v1767 = vpack.c.b16 %v1459, %v1455
    %v1768 = vpack.c.b16 %v1464, %v1460
    %v1769 = vpack.c.b16 %v1465, %v1461
    %v1770 = vpack.c.b16 %v1466, %v1462
    %v1771 = vpack.c.b16 %v1467, %v1463
    %v1772 = vpack.c.b16 %v1472, %v1468
    %v1773 = vpack.c.b16 %v1473, %v1469
    %v1774 = vpack.c.b16 %v1474, %v1470
    %v1775 = vpack.c.b16 %v1475, %v1471
    %v1776 = vpack.c.b16 %v1480, %v1476
    %v1777 = vpack.c.b16 %v1481, %v1477
    %v1778 = vpack.c.b16 %v1482, %v1478
    %v1779 = vpack.c.b16 %v1483, %v1479
    %v1780 = vpack.c.b16 %v1488, %v1484
    %v1781 = vpack.c.b16 %v1489, %v1485
    %v1782 = vpack.c.b16 %v1490, %v1486
    %v1783 = vpack.c.b16 %v1491, %v1487
    %v1784 = vpack.c.b16 %v1496, %v1492
    %v1785 = vpack.c.b16 %v1497, %v1493
    %v1786 = vpack.c.b16 %v1498, %v1494
    %v1787 = vpack.c.b16 %v1499, %v1495
    %v1788 = vpack.c.b16 %v1504, %v1500
    %v1789 = vpack.c.b16 %v1505, %v1501
    %v1790 = vpack.c.b16 %v1506, %v1502
    %v1791 = vpack.c.b16 %v1507, %v1503
    %v1792 = vpack.c.b16 %v1512, %v1508
    %v1793 = vpack.c.b16 %v1513, %v1509
    %v1794 = vpack.c.b16 %v1514, %v1510
    %v1795 = vpack.c.b16 %v1515, %v1511
    %v1796 = vpack.c.b16 %v1520, %v1516
    %v1797 = vpack.c.b16 %v1521, %v1517
    %v1798 = vpack.c.b16 %v1522, %v1518
    %v1799 = vpack.c.b16 %v1523, %v1519
    %v1800 = vpack.c.b16 %v1528, %v1524
    %v1801 = vpack.c.b16 %v1529, %v1525
    %v1802 = vpack.c.b16 %v1530, %v1526
    %v1803 = vpack.c.b16 %v1531, %v1527
    %v1804 = vpack.c.b16 %v1536, %v1532
    %v1805 = vpack.c.b16 %v1537, %v1533
    %v1806 = vpack.c.b16 %v1538, %v1534
    %v1807 = vpack.c.b16 %v1539, %v1535
    %v1808 = vpack.c.b16 %v1544, %v1540
    %v1809 = vpack.c.b16 %v1545, %v1541
    %v1810 = vpack.c.b16 %v1546, %v1542
    %v1811 = vpack.c.b16 %v1547, %v1543
    %v1812 = vpack.c.b16 %v1552, %v1548
    %v1813 = vpack.c.b16 %v1553, %v1549
    %v1814 = vpack.c.b16 %v1554, %v1550
    %v1815 = vpack.c.b16 %v1555, %v1551
    %v1816 = vpack.c.b16 %v1560, %v1556
    %v1817 = vpack.c.b16 %v1561, %v1557
    %v1818 = vpack.c.b16 %v1562, %v1558
    %v1819 = vpack.c.b16 %v1563, %v1559
    %2076 = vmatprep.subr.bf16.mxu0 %v1565
    %2077 = vmatpush1.bf16.msra.mxu0 %v1564
    %2078 = vmatprep.subr.bf16.mxu0 %v1569
    %2079 = vmatpush1.bf16.msra.mxu0 %v1568
    %2080 = vmatprep.subr.bf16.mxu0 %v1573
    %2081 = vmatpush1.bf16.msra.mxu0 %v1572
    %2082 = vmatprep.subr.bf16.mxu0 %v1577
    %2083 = vmatpush1.bf16.msra.mxu0 %v1576
    %2084 = vmatprep.subr.bf16.mxu0 %v1581
    %2085 = vmatpush1.bf16.msra.mxu0 %v1580
    %2086 = vmatprep.subr.bf16.mxu0 %v1585
    %2087 = vmatpush1.bf16.msra.mxu0 %v1584
    %2088 = vmatprep.subr.bf16.mxu0 %v1589
    %2089 = vmatpush1.bf16.msra.mxu0 %v1588
    %2090 = vmatprep.subr.bf16.mxu0 %v1593
    %2091 = vmatpush1.bf16.msra.mxu0 %v1592
    %2092 = vmatprep.subr.bf16.mxu0 %v1597
    %2093 = vmatpush1.bf16.msra.mxu0 %v1596
    %2094 = vmatprep.subr.bf16.mxu0 %v1601
    %2095 = vmatpush1.bf16.msra.mxu0 %v1600
    %2096 = vmatprep.subr.bf16.mxu0 %v1605
    %2097 = vmatpush1.bf16.msra.mxu0 %v1604
    %2098 = vmatprep.subr.bf16.mxu0 %v1609
    %2099 = vmatpush1.bf16.msra.mxu0 %v1608
    %2100 = vmatprep.subr.bf16.mxu0 %v1613
    %2101 = vmatpush1.bf16.msra.mxu0 %v1612
    %2102 = vmatprep.subr.bf16.mxu0 %v1617
    %2103 = vmatpush1.bf16.msra.mxu0 %v1616
    %2104 = vmatprep.subr.bf16.mxu0 %v1621
    %2105 = vmatpush1.bf16.msra.mxu0 %v1620
    %2106 = vmatprep.subr.bf16.mxu0 %v1625
    %2107 = vmatpush1.bf16.msra.mxu0 %v1624
    %2108 = vmatprep.mubr.bf16.mxu0 %v511
    %2109 = vmatmul.mubr.bf16.gmra.mrb[0].mxu0 %v510
    %v2110 = vpop.f32.mrb[0].mxu0
    %v2111 = vadd.f32 %v779, %v2110
    %v2112 = vpop.f32.mrb[0].mxu0
    %v2113 = vadd.f32 %v783, %v2112
    %v2114 = vpop.f32.mrb[0].mxu0
    %v2115 = vpop.f32.mrb[0].mxu0
    %2116 = vdwg.mxu0
    %2117 = vmatprep.subr.bf16.mxu0 %v1629
    %2118 = vmatpush1.bf16.msra.mxu0 %v1628
    %2119 = vmatprep.subr.bf16.mxu0 %v1633
    %2120 = vmatpush1.bf16.msra.mxu0 %v1632
    %2121 = vmatprep.subr.bf16.mxu0 %v1637
    %2122 = vmatpush1.bf16.msra.mxu0 %v1636
    %2123 = vmatprep.subr.bf16.mxu0 %v1641
    %2124 = vmatpush1.bf16.msra.mxu0 %v1640
    %2125 = vmatprep.subr.bf16.mxu0 %v1645
    %2126 = vmatpush1.bf16.msra.mxu0 %v1644
    %2127 = vmatprep.subr.bf16.mxu0 %v1649
    %2128 = vmatpush1.bf16.msra.mxu0 %v1648
    %2129 = vmatprep.subr.bf16.mxu0 %v1653
    %2130 = vmatpush1.bf16.msra.mxu0 %v1652
    %2131 = vmatprep.subr.bf16.mxu0 %v1657
    %2132 = vmatpush1.bf16.msra.mxu0 %v1656
    %2133 = vmatprep.subr.bf16.mxu0 %v1661
    %2134 = vmatpush1.bf16.msra.mxu0 %v1660
    %2135 = vmatprep.subr.bf16.mxu0 %v1665
    %2136 = vmatpush1.bf16.msra.mxu0 %v1664
    %2137 = vmatprep.subr.bf16.mxu0 %v1669
    %2138 = vmatpush1.bf16.msra.mxu0 %v1668
    %2139 = vmatprep.subr.bf16.mxu0 %v1673
    %2140 = vmatpush1.bf16.msra.mxu0 %v1672
    %2141 = vmatprep.subr.bf16.mxu0 %v1677
    %2142 = vmatpush1.bf16.msra.mxu0 %v1676
    %2143 = vmatprep.subr.bf16.mxu0 %v1681
    %2144 = vmatpush1.bf16.msra.mxu0 %v1680
    %2145 = vmatprep.subr.bf16.mxu0 %v1685
    %2146 = vmatpush1.bf16.msra.mxu0 %v1684
    %2147 = vmatprep.subr.bf16.mxu0 %v1689
    %2148 = vmatpush1.bf16.msra.mxu0 %v1688
    %2149 = vmatprep.mubr.bf16.mxu0 %v513
    %2150 = vmatmul.mubr.bf16.gmra.mrb[0].mxu0 %v512
    %v2151 = vpop.f32.mrb[0].mxu0
    %v2152 = vadd.f32 %v2111, %v2151
    %v2153 = vpop.f32.mrb[0].mxu0
    %v2154 = vadd.f32 %v2113, %v2153
    %v2155 = vpop.f32.mrb[0].mxu0
    %v2156 = vpop.f32.mrb[0].mxu0
    %2157 = vdwg.mxu0
    %2158 = vmatprep.subr.bf16.mxu0 %v1693
    %2159 = vmatpush1.bf16.msra.mxu0 %v1692
    %2160 = vmatprep.subr.bf16.mxu0 %v1697
    %2161 = vmatpush1.bf16.msra.mxu0 %v1696
    %2162 = vmatprep.subr.bf16.mxu0 %v1701
    %2163 = vmatpush1.bf16.msra.mxu0 %v1700
    %2164 = vmatprep.subr.bf16.mxu0 %v1705
    %2165 = vmatpush1.bf16.msra.mxu0 %v1704
    %2166 = vmatprep.subr.bf16.mxu0 %v1709
    %2167 = vmatpush1.bf16.msra.mxu0 %v1708
    %2168 = vmatprep.subr.bf16.mxu0 %v1713
    %2169 = vmatpush1.bf16.msra.mxu0 %v1712
    %2170 = vmatprep.subr.bf16.mxu0 %v1717
    %2171 = vmatpush1.bf16.msra.mxu0 %v1716
    %2172 = vmatprep.subr.bf16.mxu0 %v1721
    %2173 = vmatpush1.bf16.msra.mxu0 %v1720
    %2174 = vmatprep.subr.bf16.mxu0 %v1725
    %2175 = vmatpush1.bf16.msra.mxu0 %v1724
    %2176 = vmatprep.subr.bf16.mxu0 %v1729
    %2177 = vmatpush1.bf16.msra.mxu0 %v1728
    %2178 = vmatprep.subr.bf16.mxu0 %v1733
    %2179 = vmatpush1.bf16.msra.mxu0 %v1732
    %2180 = vmatprep.subr.bf16.mxu0 %v1737
    %2181 = vmatpush1.bf16.msra.mxu0 %v1736
    %2182 = vmatprep.subr.bf16.mxu0 %v1741
    %2183 = vmatpush1.bf16.msra.mxu0 %v1740
    %2184 = vmatprep.subr.bf16.mxu0 %v1745
    %2185 = vmatpush1.bf16.msra.mxu0 %v1744
    %2186 = vmatprep.subr.bf16.mxu0 %v1749
    %2187 = vmatpush1.bf16.msra.mxu0 %v1748
    %2188 = vmatprep.subr.bf16.mxu0 %v1753
    %2189 = vmatpush1.bf16.msra.mxu0 %v1752
    %2190 = vmatprep.mubr.bf16.mxu0 %v515
    %2191 = vmatmul.mubr.bf16.gmra.mrb[0].mxu0 %v514
    %v2192 = vpop.f32.mrb[0].mxu0
    %v2193 = vadd.f32 %v2152, %v2192
    %v2194 = vpop.f32.mrb[0].mxu0
    %v2195 = vadd.f32 %v2154, %v2194
    %v2196 = vpop.f32.mrb[0].mxu0
    %v2197 = vpop.f32.mrb[0].mxu0
    %2198 = vdwg.mxu0
    %2199 = vmatprep.subr.bf16.mxu0 %v1757
    %2200 = vmatpush1.bf16.msra.mxu0 %v1756
    %2201 = vmatprep.subr.bf16.mxu0 %v1761
    %2202 = vmatpush1.bf16.msra.mxu0 %v1760
    %2203 = vmatprep.subr.bf16.mxu0 %v1765
    %2204 = vmatpush1.bf16.msra.mxu0 %v1764
    %2205 = vmatprep.subr.bf16.mxu0 %v1769
    %2206 = vmatpush1.bf16.msra.mxu0 %v1768
    %2207 = vmatprep.subr.bf16.mxu0 %v1773
    %2208 = vmatpush1.bf16.msra.mxu0 %v1772
    %2209 = vmatprep.subr.bf16.mxu0 %v1777
    %2210 = vmatpush1.bf16.msra.mxu0 %v1776
    %2211 = vmatprep.subr.bf16.mxu0 %v1781
    %2212 = vmatpush1.bf16.msra.mxu0 %v1780
    %2213 = vmatprep.subr.bf16.mxu0 %v1785
    %2214 = vmatpush1.bf16.msra.mxu0 %v1784
    %2215 = vmatprep.subr.bf16.mxu0 %v1789
    %2216 = vmatpush1.bf16.msra.mxu0 %v1788
    %2217 = vmatprep.subr.bf16.mxu0 %v1793
    %2218 = vmatpush1.bf16.msra.mxu0 %v1792
    %2219 = vmatprep.subr.bf16.mxu0 %v1797
    %2220 = vmatpush1.bf16.msra.mxu0 %v1796
    %2221 = vmatprep.subr.bf16.mxu0 %v1801
    %2222 = vmatpush1.bf16.msra.mxu0 %v1800
    %2223 = vmatprep.subr.bf16.mxu0 %v1805
    %2224 = vmatpush1.bf16.msra.mxu0 %v1804
    %2225 = vmatprep.subr.bf16.mxu0 %v1809
    %2226 = vmatpush1.bf16.msra.mxu0 %v1808
    %2227 = vmatprep.subr.bf16.mxu0 %v1813
    %2228 = vmatpush1.bf16.msra.mxu0 %v1812
    %2229 = vmatprep.subr.bf16.mxu0 %v1817
    %2230 = vmatpush1.bf16.msra.mxu0 %v1816
    %2231 = vmatprep.mubr.bf16.mxu0 %v517
    %2232 = vmatmul.mubr.bf16.gmra.mrb[0].mxu0 %v516
    %v2233 = vpop.f32.mrb[0].mxu0
    %v2234 = vadd.f32 %v2193, %v2233
    %v2235 = vpop.f32.mrb[0].mxu0
    %v2236 = vadd.f32 %v2195, %v2235
    %v2237 = vpop.f32.mrb[0].mxu0
    %v2238 = vpop.f32.mrb[0].mxu0
    %2239 = vdwg.mxu0
    %2240 = vmatprep.subr.bf16.mxu0 %v1567
    %2241 = vmatpush1.bf16.msra.mxu0 %v1566
    %2242 = vmatprep.subr.bf16.mxu0 %v1571
    %2243 = vmatpush1.bf16.msra.mxu0 %v1570
    %2244 = vmatprep.subr.bf16.mxu0 %v1575
    %2245 = vmatpush1.bf16.msra.mxu0 %v1574
    %2246 = vmatprep.subr.bf16.mxu0 %v1579
    %2247 = vmatpush1.bf16.msra.mxu0 %v1578
    %2248 = vmatprep.subr.bf16.mxu0 %v1583
    %2249 = vmatpush1.bf16.msra.mxu0 %v1582
    %2250 = vmatprep.subr.bf16.mxu0 %v1587
    %2251 = vmatpush1.bf16.msra.mxu0 %v1586
    %2252 = vmatprep.subr.bf16.mxu0 %v1591
    %2253 = vmatpush1.bf16.msra.mxu0 %v1590
    %2254 = vmatprep.subr.bf16.mxu0 %v1595
    %2255 = vmatpush1.bf16.msra.mxu0 %v1594
    %2256 = vmatprep.subr.bf16.mxu0 %v1599
    %2257 = vmatpush1.bf16.msra.mxu0 %v1598
    %2258 = vmatprep.subr.bf16.mxu0 %v1603
    %2259 = vmatpush1.bf16.msra.mxu0 %v1602
    %2260 = vmatprep.subr.bf16.mxu0 %v1607
    %2261 = vmatpush1.bf16.msra.mxu0 %v1606
    %2262 = vmatprep.subr.bf16.mxu0 %v1611
    %2263 = vmatpush1.bf16.msra.mxu0 %v1610
    %2264 = vmatprep.subr.bf16.mxu0 %v1615
    %2265 = vmatpush1.bf16.msra.mxu0 %v1614
    %2266 = vmatprep.subr.bf16.mxu0 %v1619
    %2267 = vmatpush1.bf16.msra.mxu0 %v1618
    %2268 = vmatprep.subr.bf16.mxu0 %v1623
    %2269 = vmatpush1.bf16.msra.mxu0 %v1622
    %2270 = vmatprep.subr.bf16.mxu0 %v1627
    %2271 = vmatpush1.bf16.msra.mxu0 %v1626
    %2272 = vmatprep.mubr.bf16.mxu0 %v511
    %2273 = vmatmul.mubr.bf16.gmra.mrb[0].mxu0 %v510
    %v2274 = vpop.f32.mrb[0].mxu0
    %v2275 = vadd.f32 %v787, %v2274
    %v2276 = vpop.f32.mrb[0].mxu0
    %v2277 = vadd.f32 %v791, %v2276
    %v2278 = vpop.f32.mrb[0].mxu0
    %v2279 = vpop.f32.mrb[0].mxu0
    %2280 = vdwg.mxu0
    %2281 = vmatprep.subr.bf16.mxu0 %v1631
    %2282 = vmatpush1.bf16.msra.mxu0 %v1630
    %2283 = vmatprep.subr.bf16.mxu0 %v1635
    %2284 = vmatpush1.bf16.msra.mxu0 %v1634
    %2285 = vmatprep.subr.bf16.mxu0 %v1639
    %2286 = vmatpush1.bf16.msra.mxu0 %v1638
    %2287 = vmatprep.subr.bf16.mxu0 %v1643
    %2288 = vmatpush1.bf16.msra.mxu0 %v1642
    %2289 = vmatprep.subr.bf16.mxu0 %v1647
    %2290 = vmatpush1.bf16.msra.mxu0 %v1646
    %2291 = vmatprep.subr.bf16.mxu0 %v1651
    %2292 = vmatpush1.bf16.msra.mxu0 %v1650
    %2293 = vmatprep.subr.bf16.mxu0 %v1655
    %2294 = vmatpush1.bf16.msra.mxu0 %v1654
    %2295 = vmatprep.subr.bf16.mxu0 %v1659
    %2296 = vmatpush1.bf16.msra.mxu0 %v1658
    %2297 = vmatprep.subr.bf16.mxu0 %v1663
    %2298 = vmatpush1.bf16.msra.mxu0 %v1662
    %2299 = vmatprep.subr.bf16.mxu0 %v1667
    %2300 = vmatpush1.bf16.msra.mxu0 %v1666
    %2301 = vmatprep.subr.bf16.mxu0 %v1671
    %2302 = vmatpush1.bf16.msra.mxu0 %v1670
    %2303 = vmatprep.subr.bf16.mxu0 %v1675
    %2304 = vmatpush1.bf16.msra.mxu0 %v1674
    %2305 = vmatprep.subr.bf16.mxu0 %v1679
    %2306 = vmatpush1.bf16.msra.mxu0 %v1678
    %2307 = vmatprep.subr.bf16.mxu0 %v1683
    %2308 = vmatpush1.bf16.msra.mxu0 %v1682
    %2309 = vmatprep.subr.bf16.mxu0 %v1687
    %2310 = vmatpush1.bf16.msra.mxu0 %v1686
    %2311 = vmatprep.subr.bf16.mxu0 %v1691
    %2312 = vmatpush1.bf16.msra.mxu0 %v1690
    %2313 = vmatprep.mubr.bf16.mxu0 %v513
    %2314 = vmatmul.mubr.bf16.gmra.mrb[0].mxu0 %v512
    %v2315 = vpop.f32.mrb[0].mxu0
    %v2316 = vadd.f32 %v2275, %v2315
    %v2317 = vpop.f32.mrb[0].mxu0
    %v2318 = vadd.f32 %v2277, %v2317
    %v2319 = vpop.f32.mrb[0].mxu0
    %v2320 = vpop.f32.mrb[0].mxu0
    %2321 = vdwg.mxu0
    %2322 = vmatprep.subr.bf16.mxu0 %v1695
    %2323 = vmatpush1.bf16.msra.mxu0 %v1694
    %2324 = vmatprep.subr.bf16.mxu0 %v1699
    %2325 = vmatpush1.bf16.msra.mxu0 %v1698
    %2326 = vmatprep.subr.bf16.mxu0 %v1703
    %2327 = vmatpush1.bf16.msra.mxu0 %v1702
    %2328 = vmatprep.subr.bf16.mxu0 %v1707
    %2329 = vmatpush1.bf16.msra.mxu0 %v1706
    %2330 = vmatprep.subr.bf16.mxu0 %v1711
    %2331 = vmatpush1.bf16.msra.mxu0 %v1710
    %2332 = vmatprep.subr.bf16.mxu0 %v1715
    %2333 = vmatpush1.bf16.msra.mxu0 %v1714
    %2334 = vmatprep.subr.bf16.mxu0 %v1719
    %2335 = vmatpush1.bf16.msra.mxu0 %v1718
    %2336 = vmatprep.subr.bf16.mxu0 %v1723
    %2337 = vmatpush1.bf16.msra.mxu0 %v1722
    %2338 = vmatprep.subr.bf16.mxu0 %v1727
    %2339 = vmatpush1.bf16.msra.mxu0 %v1726
    %2340 = vmatprep.subr.bf16.mxu0 %v1731
    %2341 = vmatpush1.bf16.msra.mxu0 %v1730
    %2342 = vmatprep.subr.bf16.mxu0 %v1735
    %2343 = vmatpush1.bf16.msra.mxu0 %v1734
    %2344 = vmatprep.subr.bf16.mxu0 %v1739
    %2345 = vmatpush1.bf16.msra.mxu0 %v1738
    %2346 = vmatprep.subr.bf16.mxu0 %v1743
    %2347 = vmatpush1.bf16.msra.mxu0 %v1742
    %2348 = vmatprep.subr.bf16.mxu0 %v1747
    %2349 = vmatpush1.bf16.msra.mxu0 %v1746
    %2350 = vmatprep.subr.bf16.mxu0 %v1751
    %2351 = vmatpush1.bf16.msra.mxu0 %v1750
    %2352 = vmatprep.subr.bf16.mxu0 %v1755
    %2353 = vmatpush1.bf16.msra.mxu0 %v1754
    %2354 = vmatprep.mubr.bf16.mxu0 %v515
    %2355 = vmatmul.mubr.bf16.gmra.mrb[0].mxu0 %v514
    %v2356 = vpop.f32.mrb[0].mxu0
    %v2357 = vadd.f32 %v2316, %v2356
    %v2358 = vpop.f32.mrb[0].mxu0
    %v2359 = vadd.f32 %v2318, %v2358
    %v2360 = vpop.f32.mrb[0].mxu0
    %v2361 = vpop.f32.mrb[0].mxu0
    %2362 = vdwg.mxu0
    %2363 = vmatprep.subr.bf16.mxu0 %v1759
    %2364 = vmatpush1.bf16.msra.mxu0 %v1758
    %2365 = vmatprep.subr.bf16.mxu0 %v1763
    %2366 = vmatpush1.bf16.msra.mxu0 %v1762
    %2367 = vmatprep.subr.bf16.mxu0 %v1767
    %2368 = vmatpush1.bf16.msra.mxu0 %v1766
    %2369 = vmatprep.subr.bf16.mxu0 %v1771
    %2370 = vmatpush1.bf16.msra.mxu0 %v1770
    %2371 = vmatprep.subr.bf16.mxu0 %v1775
    %2372 = vmatpush1.bf16.msra.mxu0 %v1774
    %2373 = vmatprep.subr.bf16.mxu0 %v1779
    %2374 = vmatpush1.bf16.msra.mxu0 %v1778
    %2375 = vmatprep.subr.bf16.mxu0 %v1783
    %2376 = vmatpush1.bf16.msra.mxu0 %v1782
    %2377 = vmatprep.subr.bf16.mxu0 %v1787
    %2378 = vmatpush1.bf16.msra.mxu0 %v1786
    %2379 = vmatprep.subr.bf16.mxu0 %v1791
    %2380 = vmatpush1.bf16.msra.mxu0 %v1790
    %2381 = vmatprep.subr.bf16.mxu0 %v1795
    %2382 = vmatpush1.bf16.msra.mxu0 %v1794
    %2383 = vmatprep.subr.bf16.mxu0 %v1799
    %2384 = vmatpush1.bf16.msra.mxu0 %v1798
    %2385 = vmatprep.subr.bf16.mxu0 %v1803
    %2386 = vmatpush1.bf16.msra.mxu0 %v1802
    %2387 = vmatprep.subr.bf16.mxu0 %v1807
    %2388 = vmatpush1.bf16.msra.mxu0 %v1806
    %2389 = vmatprep.subr.bf16.mxu0 %v1811
    %2390 = vmatpush1.bf16.msra.mxu0 %v1810
    %2391 = vmatprep.subr.bf16.mxu0 %v1815
    %2392 = vmatpush1.bf16.msra.mxu0 %v1814
    %2393 = vmatprep.subr.bf16.mxu0 %v1819
    %2394 = vmatpush1.bf16.msra.mxu0 %v1818
    %2395 = vmatprep.mubr.bf16.mxu0 %v517
    %2396 = vmatmul.mubr.bf16.gmra.mrb[0].mxu0 %v516
    %v2397 = vpop.f32.mrb[0].mxu0
    %v2398 = vadd.f32 %v2357, %v2397
    %v2399 = vpop.f32.mrb[0].mxu0
    %v2400 = vadd.f32 %v2359, %v2399
    %v2401 = vpop.f32.mrb[0].mxu0
    %v2402 = vpop.f32.mrb[0].mxu0
    %2403 = vdwg.mxu0
    %v2404 = vmax.f32 %v2234, 0.0
    %v2405 = vmax.f32 %v2236, 0.0
    %v2406 = vmax.f32 %v2398, 0.0
    %v2407 = vmax.f32 %v2400, 0.0
    %v2408 = vpack.c.bf16 %v2404, %v2404
    %v2409 = vpack.c.bf16 %v2405, %v2405
    %v2410 = vpack.c.bf16 %v2406, %v2406
    %v2411 = vpack.c.bf16 %v2407, %v2407
    %v2412 = vld [vmem:[#allocation11] sm:$0xf]
    %v2413 = vld [vmem:[#allocation11 + $0x4] sm:$0xf]
    %v2414 = vld [vmem:[#allocation11 + $0x8] sm:$0xf]
    %v2415 = vld [vmem:[#allocation11 + $0xc] sm:$0xf]
    %v2416 = vld [vmem:[#allocation11 + $0x10] sm:$0xf]
    %v2417 = vld [vmem:[#allocation11 + $0x14] sm:$0xf]
    %v2418 = vld [vmem:[#allocation11 + $0x18] sm:$0xf]
    %v2419 = vld [vmem:[#allocation11 + $0x1c] sm:$0xf]
    %v2420 = vld [vmem:[#allocation11 + $0x20] sm:$0xf]
    %v2421 = vld [vmem:[#allocation11 + $0x24] sm:$0xf]
    %v2422 = vld [vmem:[#allocation11 + $0x28] sm:$0xf]
    %v2423 = vld [vmem:[#allocation11 + $0x2c] sm:$0xf]
    %v2424 = vld [vmem:[#allocation11 + $0x30] sm:$0xf]
    %v2425 = vld [vmem:[#allocation11 + $0x34] sm:$0xf]
    %v2426 = vld [vmem:[#allocation11 + $0x38] sm:$0xf]
    %v2427 = vld [vmem:[#allocation11 + $0x3c] sm:$0xf]
    %v2428 = vld [vmem:[#allocation11 + $0x40] sm:$0xf]
    %v2429 = vld [vmem:[#allocation11 + $0x44] sm:$0xf]
    %v2430 = vld [vmem:[#allocation11 + $0x48] sm:$0xf]
    %v2431 = vld [vmem:[#allocation11 + $0x4c] sm:$0xf]
    %v2432 = vld [vmem:[#allocation11 + $0x50] sm:$0xf]
    %v2433 = vld [vmem:[#allocation11 + $0x54] sm:$0xf]
    %v2434 = vld [vmem:[#allocation11 + $0x58] sm:$0xf]
    %v2435 = vld [vmem:[#allocation11 + $0x5c] sm:$0xf]
    %v2436 = vld [vmem:[#allocation11 + $0x60] sm:$0xf]
    %v2437 = vld [vmem:[#allocation11 + $0x64] sm:$0xf]
    %v2438 = vld [vmem:[#allocation11 + $0x68] sm:$0xf]
    %v2439 = vld [vmem:[#allocation11 + $0x6c] sm:$0xf]
    %v2440 = vld [vmem:[#allocation11 + $0x70] sm:$0xf]
    %v2441 = vld [vmem:[#allocation11 + $0x74] sm:$0xf]
    %v2442 = vld [vmem:[#allocation11 + $0x78] sm:$0xf]
    %v2443 = vld [vmem:[#allocation11 + $0x7c] sm:$0xf]
    %v2444 = vld [vmem:[#allocation11 + $0x80] sm:$0xf]
    %v2445 = vld [vmem:[#allocation11 + $0x84] sm:$0xf]
    %v2446 = vld [vmem:[#allocation11 + $0x88] sm:$0xf]
    %v2447 = vld [vmem:[#allocation11 + $0x8c] sm:$0xf]
    %v2448 = vld [vmem:[#allocation11 + $0x90] sm:$0xf]
    %v2449 = vld [vmem:[#allocation11 + $0x94] sm:$0xf]
    %v2450 = vld [vmem:[#allocation11 + $0x98] sm:$0xf]
    %v2451 = vld [vmem:[#allocation11 + $0x9c] sm:$0xf]
    %v2452 = vld [vmem:[#allocation11 + $0xa0] sm:$0xf]
    %v2453 = vld [vmem:[#allocation11 + $0xa4] sm:$0xf]
    %v2454 = vld [vmem:[#allocation11 + $0xa8] sm:$0xf]
    %v2455 = vld [vmem:[#allocation11 + $0xac] sm:$0xf]
    %v2456 = vld [vmem:[#allocation11 + $0xb0] sm:$0xf]
    %v2457 = vld [vmem:[#allocation11 + $0xb4] sm:$0xf]
    %v2458 = vld [vmem:[#allocation11 + $0xb8] sm:$0xf]
    %v2459 = vld [vmem:[#allocation11 + $0xbc] sm:$0xf]
    %v2460 = vld [vmem:[#allocation11 + $0xc0] sm:$0xf]
    %v2461 = vld [vmem:[#allocation11 + $0xc4] sm:$0xf]
    %v2462 = vld [vmem:[#allocation11 + $0xc8] sm:$0xf]
    %v2463 = vld [vmem:[#allocation11 + $0xcc] sm:$0xf]
    %v2464 = vld [vmem:[#allocation11 + $0xd0] sm:$0xf]
    %v2465 = vld [vmem:[#allocation11 + $0xd4] sm:$0xf]
    %v2466 = vld [vmem:[#allocation11 + $0xd8] sm:$0xf]
    %v2467 = vld [vmem:[#allocation11 + $0xdc] sm:$0xf]
    %v2468 = vld [vmem:[#allocation11 + $0xe0] sm:$0xf]
    %v2469 = vld [vmem:[#allocation11 + $0xe4] sm:$0xf]
    %v2470 = vld [vmem:[#allocation11 + $0xe8] sm:$0xf]
    %v2471 = vld [vmem:[#allocation11 + $0xec] sm:$0xf]
    %v2472 = vld [vmem:[#allocation11 + $0xf0] sm:$0xf]
    %v2473 = vld [vmem:[#allocation11 + $0xf4] sm:$0xf]
    %v2474 = vld [vmem:[#allocation11 + $0xf8] sm:$0xf]
    %v2475 = vld [vmem:[#allocation11 + $0xfc] sm:$0xf]
    %v2476 = vld [vmem:[%s6] sm:$0x1]
    %v2478 = vlaneseq
    %v2479 = vshrl.u32 %v2478, 7
    %v2480 = vsub.s32 0, %v2479
    %v2481 = vrot.slane %v2476, %v2480
    %v2547 = vunpack.c.l.b16 %v2412
    %v2548 = vunpack.c.l.b16 %v2413
    %v2549 = vunpack.c.l.b16 %v2414
    %v2550 = vunpack.c.l.b16 %v2415
    %v2551 = vunpack.c.l.b16 %v2416
    %v2552 = vunpack.c.l.b16 %v2417
    %v2553 = vunpack.c.l.b16 %v2418
    %v2554 = vunpack.c.l.b16 %v2419
    %v2555 = vunpack.c.l.b16 %v2420
    %v2556 = vunpack.c.l.b16 %v2421
    %v2557 = vunpack.c.l.b16 %v2422
    %v2558 = vunpack.c.l.b16 %v2423
    %v2559 = vunpack.c.l.b16 %v2424
    %v2560 = vunpack.c.l.b16 %v2425
    %v2561 = vunpack.c.l.b16 %v2426
    %v2562 = vunpack.c.l.b16 %v2427
    %v2563 = vunpack.c.l.b16 %v2428
    %v2564 = vunpack.c.l.b16 %v2429
    %v2565 = vunpack.c.l.b16 %v2430
    %v2566 = vunpack.c.l.b16 %v2431
    %v2567 = vunpack.c.l.b16 %v2432
    %v2568 = vunpack.c.l.b16 %v2433
    %v2569 = vunpack.c.l.b16 %v2434
    %v2570 = vunpack.c.l.b16 %v2435
    %v2571 = vunpack.c.l.b16 %v2436
    %v2572 = vunpack.c.l.b16 %v2437
    %v2573 = vunpack.c.l.b16 %v2438
    %v2574 = vunpack.c.l.b16 %v2439
    %v2575 = vunpack.c.l.b16 %v2440
    %v2576 = vunpack.c.l.b16 %v2441
    %v2577 = vunpack.c.l.b16 %v2442
    %v2578 = vunpack.c.l.b16 %v2443
    %v2579 = vunpack.c.l.b16 %v2444
    %v2580 = vunpack.c.l.b16 %v2445
    %v2581 = vunpack.c.l.b16 %v2446
    %v2582 = vunpack.c.l.b16 %v2447
    %v2583 = vunpack.c.l.b16 %v2448
    %v2584 = vunpack.c.l.b16 %v2449
    %v2585 = vunpack.c.l.b16 %v2450
    %v2586 = vunpack.c.l.b16 %v2451
    %v2587 = vunpack.c.l.b16 %v2452
    %v2588 = vunpack.c.l.b16 %v2453
    %v2589 = vunpack.c.l.b16 %v2454
    %v2590 = vunpack.c.l.b16 %v2455
    %v2591 = vunpack.c.l.b16 %v2456
    %v2592 = vunpack.c.l.b16 %v2457
    %v2593 = vunpack.c.l.b16 %v2458
    %v2594 = vunpack.c.l.b16 %v2459
    %v2595 = vunpack.c.l.b16 %v2460
    %v2596 = vunpack.c.l.b16 %v2461
    %v2597 = vunpack.c.l.b16 %v2462
    %v2598 = vunpack.c.l.b16 %v2463
    %v2599 = vunpack.c.l.b16 %v2464
    %v2600 = vunpack.c.l.b16 %v2465
    %v2601 = vunpack.c.l.b16 %v2466
    %v2602 = vunpack.c.l.b16 %v2467
    %v2603 = vunpack.c.l.b16 %v2468
    %v2604 = vunpack.c.l.b16 %v2469
    %v2605 = vunpack.c.l.b16 %v2470
    %v2606 = vunpack.c.l.b16 %v2471
    %v2607 = vunpack.c.l.b16 %v2472
    %v2608 = vunpack.c.l.b16 %v2473
    %v2609 = vunpack.c.l.b16 %v2474
    %v2610 = vunpack.c.l.b16 %v2475
    %v2611 = vpack.c.b16 %v2548, %v2547
    %v2612 = vpack.c.b16 %v2550, %v2549
    %v2613 = vpack.c.b16 %v2552, %v2551
    %v2614 = vpack.c.b16 %v2554, %v2553
    %v2615 = vpack.c.b16 %v2556, %v2555
    %v2616 = vpack.c.b16 %v2558, %v2557
    %v2617 = vpack.c.b16 %v2560, %v2559
    %v2618 = vpack.c.b16 %v2562, %v2561
    %v2619 = vpack.c.b16 %v2564, %v2563
    %v2620 = vpack.c.b16 %v2566, %v2565
    %v2621 = vpack.c.b16 %v2568, %v2567
    %v2622 = vpack.c.b16 %v2570, %v2569
    %v2623 = vpack.c.b16 %v2572, %v2571
    %v2624 = vpack.c.b16 %v2574, %v2573
    %v2625 = vpack.c.b16 %v2576, %v2575
    %v2626 = vpack.c.b16 %v2578, %v2577
    %v2627 = vpack.c.b16 %v2580, %v2579
    %v2628 = vpack.c.b16 %v2582, %v2581
    %v2629 = vpack.c.b16 %v2584, %v2583
    %v2630 = vpack.c.b16 %v2586, %v2585
    %v2631 = vpack.c.b16 %v2588, %v2587
    %v2632 = vpack.c.b16 %v2590, %v2589
    %v2633 = vpack.c.b16 %v2592, %v2591
    %v2634 = vpack.c.b16 %v2594, %v2593
    %v2635 = vpack.c.b16 %v2596, %v2595
    %v2636 = vpack.c.b16 %v2598, %v2597
    %v2637 = vpack.c.b16 %v2600, %v2599
    %v2638 = vpack.c.b16 %v2602, %v2601
    %v2639 = vpack.c.b16 %v2604, %v2603
    %v2640 = vpack.c.b16 %v2606, %v2605
    %v2641 = vpack.c.b16 %v2608, %v2607
    %v2642 = vpack.c.b16 %v2610, %v2609
    %2675 = vmatprep.subr.bf16.mxu0 0
    %2676 = vmatpush1.bf16.msra.mxu0 %v2611
    %2677 = vmatprep.subr.bf16.mxu0 0
    %2678 = vmatpush1.bf16.msra.mxu0 %v2612
    %2679 = vmatprep.subr.bf16.mxu0 0
    %2680 = vmatpush1.bf16.msra.mxu0 %v2613
    %2681 = vmatprep.subr.bf16.mxu0 0
    %2682 = vmatpush1.bf16.msra.mxu0 %v2614
    %2683 = vmatprep.subr.bf16.mxu0 0
    %2684 = vmatpush1.bf16.msra.mxu0 %v2615
    %2685 = vmatprep.subr.bf16.mxu0 0
    %2686 = vmatpush1.bf16.msra.mxu0 %v2616
    %2687 = vmatprep.subr.bf16.mxu0 0
    %2688 = vmatpush1.bf16.msra.mxu0 %v2617
    %2689 = vmatprep.subr.bf16.mxu0 0
    %2690 = vmatpush1.bf16.msra.mxu0 %v2618
    %2691 = vmatprep.subr.bf16.mxu0 0
    %2692 = vmatpush1.bf16.msra.mxu0 %v2619
    %2693 = vmatprep.subr.bf16.mxu0 0
    %2694 = vmatpush1.bf16.msra.mxu0 %v2620
    %2695 = vmatprep.subr.bf16.mxu0 0
    %2696 = vmatpush1.bf16.msra.mxu0 %v2621
    %2697 = vmatprep.subr.bf16.mxu0 0
    %2698 = vmatpush1.bf16.msra.mxu0 %v2622
    %2699 = vmatprep.subr.bf16.mxu0 0
    %2700 = vmatpush1.bf16.msra.mxu0 %v2623
    %2701 = vmatprep.subr.bf16.mxu0 0
    %2702 = vmatpush1.bf16.msra.mxu0 %v2624
    %2703 = vmatprep.subr.bf16.mxu0 0
    %2704 = vmatpush1.bf16.msra.mxu0 %v2625
    %2705 = vmatprep.subr.bf16.mxu0 0
    %2706 = vmatpush1.bf16.msra.mxu0 %v2626
    %2707 = vmatprep.mubr.bf16.mxu0 %v2409
    %2708 = vmatmul.mubr.bf16.gmra.mrb[0].mxu0 %v2408
    %v2709 = vpop.f32.mrb[0].mxu0
    %v2710 = vadd.f32 %v2481, %v2709
    %v2711 = vpop.f32.mrb[0].mxu0
    %v2712 = vpop.f32.mrb[0].mxu0
    %v2713 = vpop.f32.mrb[0].mxu0
    %2714 = vdwg.mxu0
    %2715 = vmatprep.subr.bf16.mxu0 0
    %2716 = vmatpush1.bf16.msra.mxu0 %v2627
    %2717 = vmatprep.subr.bf16.mxu0 0
    %2718 = vmatpush1.bf16.msra.mxu0 %v2628
    %2719 = vmatprep.subr.bf16.mxu0 0
    %2720 = vmatpush1.bf16.msra.mxu0 %v2629
    %2721 = vmatprep.subr.bf16.mxu0 0
    %2722 = vmatpush1.bf16.msra.mxu0 %v2630
    %2723 = vmatprep.subr.bf16.mxu0 0
    %2724 = vmatpush1.bf16.msra.mxu0 %v2631
    %2725 = vmatprep.subr.bf16.mxu0 0
    %2726 = vmatpush1.bf16.msra.mxu0 %v2632
    %2727 = vmatprep.subr.bf16.mxu0 0
    %2728 = vmatpush1.bf16.msra.mxu0 %v2633
    %2729 = vmatprep.subr.bf16.mxu0 0
    %2730 = vmatpush1.bf16.msra.mxu0 %v2634
    %2731 = vmatprep.subr.bf16.mxu0 0
    %2732 = vmatpush1.bf16.msra.mxu0 %v2635
    %2733 = vmatprep.subr.bf16.mxu0 0
    %2734 = vmatpush1.bf16.msra.mxu0 %v2636
    %2735 = vmatprep.subr.bf16.mxu0 0
    %2736 = vmatpush1.bf16.msra.mxu0 %v2637
    %2737 = vmatprep.subr.bf16.mxu0 0
    %2738 = vmatpush1.bf16.msra.mxu0 %v2638
    %2739 = vmatprep.subr.bf16.mxu0 0
    %2740 = vmatpush1.bf16.msra.mxu0 %v2639
    %2741 = vmatprep.subr.bf16.mxu0 0
    %2742 = vmatpush1.bf16.msra.mxu0 %v2640
    %2743 = vmatprep.subr.bf16.mxu0 0
    %2744 = vmatpush1.bf16.msra.mxu0 %v2641
    %2745 = vmatprep.subr.bf16.mxu0 0
    %2746 = vmatpush1.bf16.msra.mxu0 %v2642
    %2747 = vmatprep.mubr.bf16.mxu0 %v2411
    %2748 = vmatmul.mubr.bf16.gmra.mrb[0].mxu0 %v2410
    %v2749 = vpop.f32.mrb[0].mxu0
    %v2750 = vadd.f32 %v2710, %v2749
    %v2751 = vpop.f32.mrb[0].mxu0
    %v2752 = vpop.f32.mrb[0].mxu0
    %v2753 = vpop.f32.mrb[0].mxu0
    %2754 = vdwg.mxu0
    %v2755 = vmax.f32 %v2750, 0.0
    %v2756 = vld [vmem:[%s7] sm:$0xff]
    %2757 = vmatprep.subr.mxu0 0.0
    %2758 = vmatpush1.xpose.msra.mxu0 %v2755
    %2759 = vmatprep.subr.mxu0 0.0
    %2760 = vmatpush1.xpose.msra.mxu0 0.0
    %2761 = vmatprep.subr.mxu0 0.0
    %2762 = vmatpush1.xpose.msra.mxu0 0.0
    %2763 = vmatprep.subr.mxu0 0.0
    %2764 = vmatpush1.xpose.msra.mxu0 0.0
    %2765 = vmatprep.subr.mxu0 0.0
    %2766 = vmatpush1.xpose.msra.mxu0 0.0
    %2767 = vmatprep.subr.mxu0 0.0
    %2768 = vmatpush1.xpose.msra.mxu0 0.0
    %2769 = vmatprep.subr.mxu0 0.0
    %2770 = vmatpush1.xpose.msra.mxu0 0.0
    %2771 = vmatprep.subr.mxu0 0.0
    %2772 = vmatpush1.xpose.msra.mxu0 0.0
    %2773 = vmatprep.subr.mxu0 0.0
    %2774 = vmatpush1.xpose.msra.mxu0 0.0
    %2775 = vmatprep.subr.mxu0 0.0
    %2776 = vmatpush1.xpose.msra.mxu0 0.0
    %2777 = vmatprep.subr.mxu0 0.0
    %2778 = vmatpush1.xpose.msra.mxu0 0.0
    %2779 = vmatprep.subr.mxu0 0.0
    %2780 = vmatpush1.xpose.msra.mxu0 0.0
    %2781 = vmatprep.subr.mxu0 0.0
    %2782 = vmatpush1.xpose.msra.mxu0 0.0
    %2783 = vmatprep.subr.mxu0 0.0
    %2784 = vmatpush1.xpose.msra.mxu0 0.0
    %2785 = vmatprep.subr.mxu0 0.0
    %2786 = vmatpush1.xpose.msra.mxu0 0.0
    %2787 = vmatprep.subr.mxu0 0.0
    %2788 = vmatpush1.xpose.msra.mxu0 0.0
    %2789 = vmatprep.subr.mxu0 0.0
    %2790 = vmatpush1.xpose.msra.mxu0 0.0
    %2791 = vmatprep.subr.mxu0 0.0
    %2792 = vmatpush1.xpose.msra.mxu0 0.0
    %2793 = vmatprep.subr.mxu0 0.0
    %2794 = vmatpush1.xpose.msra.mxu0 0.0
    %2795 = vmatprep.subr.mxu0 0.0
    %2796 = vmatpush1.xpose.msra.mxu0 0.0
    %2797 = vmatprep.subr.mxu0 0.0
    %2798 = vmatpush1.xpose.msra.mxu0 0.0
    %2799 = vmatprep.subr.mxu0 0.0
    %2800 = vmatpush1.xpose.msra.mxu0 0.0
    %2801 = vmatprep.subr.mxu0 0.0
    %2802 = vmatpush1.xpose.msra.mxu0 0.0
    %2803 = vmatprep.subr.mxu0 0.0
    %2804 = vmatpush1.xpose.msra.mxu0 0.0
    %2805 = vmatprep.subr.mxu0 0.0
    %2806 = vmatpush1.xpose.msra.mxu0 0.0
    %2807 = vmatprep.subr.mxu0 0.0
    %2808 = vmatpush1.xpose.msra.mxu0 0.0
    %2809 = vmatprep.subr.mxu0 0.0
    %2810 = vmatpush1.xpose.msra.mxu0 0.0
    %2811 = vmatprep.subr.mxu0 0.0
    %2812 = vmatpush1.xpose.msra.mxu0 0.0
    %2813 = vmatprep.subr.mxu0 0.0
    %2814 = vmatpush1.xpose.msra.mxu0 0.0
    %2815 = vmatprep.subr.mxu0 0.0
    %2816 = vmatpush1.xpose.msra.mxu0 0.0
    %2817 = vmatprep.subr.mxu0 0.0
    %2818 = vmatpush1.xpose.msra.mxu0 0.0
    %2819 = vmatprep.subr.mxu0 0.0
    %2820 = vmatpush1.xpose.msra.mxu0 0.0
    %2821 = vmatprep.mubr.f32.mxu0 0.0
    %2822 = vmatmul.mubr.f32.gmra.mrb[0].mxu0 %v2756
    %v2823 = vpop.f32.mrb[0].mxu0
    %v2824 = vadd.f32 0.0, %v2823
    %v2825 = vpop.f32.mrb[0].mxu0
    %2826 = vdwg.mxu0
    %s2827 = sld [smem:[#allocation2]]
    %v2828 = vstv %s2827
    %v2829 = vadd.f32 %v2824, %v2828
    %v2830 = vsub.f32 0.0, %v2829
    %v2831 = vmul.f32 %v2830, 1.442695
    %v2832 = vpow.pop %v2831
    %v2833 = vadd.f32 %v2832, 1.0
    %v2834 = vrcp.pop %v2833
    %vm2835 = vcmask 57344
    %2836 = vst.msk [vmem:[#allocation12] sm:$0x1] %vm2835, %v2834
    // Predicated region
    $region58: #{tpu_custom_call.1} parent=1 // pred_check
      _
    $region59: #{tpu_custom_call.1} parent=1 // pred_check_branch
      %2838 = sbr.rel (0) target = $region61
    $region60: #{tpu_custom_call.1} parent=1 // pred_region
      %s2840 = ssub.s32 16, 16
      %2841 = vsyncadd [#allocation5], %s2840
      %s2843 = sshll.u32 [#allocation12], 4
      %s2844 = int_to_ptr.vmem [resolvable:$true] %s2843
      %2846 = dma.vmem_to_hbm [thread:$0]  %s2844, 16, %s9, [#allocation5]
    $region61: #{tpu_custom_call.1} parent=1 // pred_fallthru
      _
    // Predicated region
    $region62: #{tpu_custom_call.1} parent=1 // pred_check
      _
    $region63: #{tpu_custom_call.1} parent=1 // pred_check_branch
      %2848 = sbr.rel (0) target = $region65
    $region64: #{tpu_custom_call.1} parent=1 // pred_region
      %2849 = dma.done [#allocation5], 16
    $region65: #{tpu_custom_call.1} parent=1 // pred_fallthru
      _
    %2850 = vsyncpa [#allocation4], 1
    %2851 = vsyncpa [#allocation7], 1
    %2852 = vsyncpa [#allocation10], 1
    %2853 = vsyncpa [#allocation5], 1

</llo_original>
